<compile_context>
chip_gen: v7x
topology: tpu7x:2x2x1
jax: 0.10.0
libtpu: 0.0.40
codegen_flags: <defaults>
</compile_context>

<pallas_src>
import jax
import jax.numpy as jnp
from jax.experimental import pallas as pl
from jax.experimental.pallas import tpu as pltpu


# --------------------------------------------------------------------------
# Composite conv kernel: (conv2 ∘ conv1) == one 5x5 valid conv, 3 -> 1 chans.
# One image per grid step; W sits on the 128-lane axis (lane-dense tiles).
# --------------------------------------------------------------------------
def _conv5x5_kernel(x_ref, w_ref, b_ref, o_ref):
    # x_ref : (1, CIN, H, W) f32   VMEM
    # w_ref : (CIN*5*5,) f32       SMEM  (composite weights, flattened (ci,fy,fx))
    # b_ref : (1,) f32             SMEM  (composite bias)
    # o_ref : (1, Ho, Wo) f32      VMEM  (Ho = H-4, Wo = W-4)
    _, cin, h, w = x_ref.shape
    _, ho, wo = o_ref.shape
    K = 5

    xs = [x_ref[0, ci] for ci in range(cin)]      # (H, W) planes, loaded once
    acc = jnp.zeros((ho, wo), dtype=jnp.float32)
    for fy in range(K):
        for fx in range(K):
            # Weight the channels first (full-tile scalar*vector FMAs), then do
            # a single shifted slice per tap instead of one per (tap, channel).
            t = w_ref[fy * K + fx] * xs[0]
            for ci in range(1, cin):
                t = t + w_ref[ci * K * K + fy * K + fx] * xs[ci]
            acc = acc + t[fy:fy + ho, fx:fx + wo]
    o_ref[0] = (acc + b_ref[0]).astype(o_ref.dtype)


def fused_conv(x_nchw, w1_oihw, b1, w2_oihw, b2):
    """conv2(conv1(x)) for two 3x3/stride-1/valid convs.  Returns (N, H-4, W-4) f32."""
    n, cin, h, w = x_nchw.shape
    ho, wo = h - 4, w - 4
    k = w1_oihw.shape[-1]          # 3
    K = 2 * k - 1                  # 5

    # --- compose the two linear convolutions into one (cin, 5, 5) kernel -----
    # z = b2 + sum_co w2[co]*(b1[co] + w1[co] * x)  ==>  w_eff * x + b_eff
    w1f = w1_oihw.astype(jnp.float32)                # (16, 3, 3, 3)  OIHW
    w2f = w2_oihw[0].astype(jnp.float32)             # (16, 3, 3)
    w_eff = jnp.zeros((cin, K, K), jnp.float32)
    for ey in range(k):
        for ex in range(k):
            w_eff = w_eff.at[:, ey:ey + k, ex:ex + k].add(
                jnp.einsum('o,oiyx->iyx', w2f[:, ey, ex], w1f))
    b_eff = (b2.astype(jnp.float32)[0]
             + jnp.sum(b1.astype(jnp.float32) * jnp.sum(w2f, axis=(1, 2))))

    smem = pl.BlockSpec(memory_space=pltpu.MemorySpace.SMEM)
    return pl.pallas_call(
        _conv5x5_kernel,
        out_shape=jax.ShapeDtypeStruct((n, ho, wo), jnp.float32),
        grid=(n,),
        in_specs=[
            pl.BlockSpec((1, cin, h, w), lambda i: (i, 0, 0, 0)),
            smem, smem,
        ],
        out_specs=pl.BlockSpec((1, ho, wo), lambda i: (i, 0, 0)),
        compiler_params=pltpu.CompilerParams(
            dimension_semantics=("parallel",)),
    )(x_nchw.astype(jnp.float32),
      w_eff.reshape(-1),
      b_eff.reshape(1))


# --------------------------------------------------------------------------
# FC head: Linear -> Tanh -> BatchNorm1d -> Linear -> softmax
# K-tiled over the contraction axis so the bf16 w_fc1 stream is pipelined.
# --------------------------------------------------------------------------
def _fc_head_kernel(x_ref, w1_ref, b1_ref, g_ref, bta_ref, w2_ref,
                    probs_ref, acc_ref):
    kk = pl.program_id(0)

    @pl.when(kk == 0)
    def _():
        acc_ref[...] = jnp.zeros_like(acc_ref)

    # bf16 x bf16 -> f32 MXU matmul, accumulated across K tiles.
    acc_ref[...] += jnp.dot(x_ref[...], w1_ref[...],
                            preferred_element_type=jnp.float32)

    @pl.when(kk == pl.num_programs(0) - 1)
    def _():
        h = acc_ref[...] + b1_ref[...]
        h = jnp.tanh(h)
        # BatchNorm1d, training mode: batch mean, biased variance, eps=1e-5.
        # (Batch rows are never padded, so the statistics stay exact.)
        mean = jnp.mean(h, axis=0, keepdims=True)
        var = jnp.mean((h - mean) ** 2, axis=0, keepdims=True)
        h = (h - mean) * jax.lax.rsqrt(var + 1e-5)
        h = h * g_ref[...] + bta_ref[...]
        logits = jnp.dot(h, w2_ref[...], preferred_element_type=jnp.float32)
        m = jnp.max(logits, axis=1, keepdims=True)
        e = jnp.exp(logits - m)
        probs_ref[...] = (e / jnp.sum(e, axis=1, keepdims=True)).astype(
            probs_ref.dtype)


def fc_head(x, w1, b1, gamma, beta, w2, *, tk=2048):
    n, f = x.shape
    nh = w1.shape[1]
    nc = w2.shape[1]

    # Lane-align and K-tile the contraction axis; zero padding is exact.
    f_lane = pl.cdiv(f, 128) * 128
    tk = min(tk, f_lane)
    f_pad = pl.cdiv(f_lane, tk) * tk
    n_k = f_pad // tk

    # TODO(synk): in production keep a persistent padded bf16 copy of w_fc1
    # instead of casting/padding on every call.
    if f_pad == f:
        x_p = x.astype(jnp.bfloat16)
        w1_p = w1.astype(jnp.bfloat16)
    else:
        x_p = jnp.zeros((n, f_pad), jnp.bfloat16).at[:, :f].set(
            x.astype(jnp.bfloat16))
        w1_p = jnp.zeros((f_pad, nh), jnp.bfloat16).at[:f, :].set(
            w1.astype(jnp.bfloat16))

    return pl.pallas_call(
        _fc_head_kernel,
        out_shape=jax.ShapeDtypeStruct((n, nc), jnp.float32),
        grid=(n_k,),
        in_specs=[
            pl.BlockSpec((n, tk), lambda k: (0, k)),     # activations
            pl.BlockSpec((tk, nh), lambda k: (k, 0)),    # streamed bf16 weight
            pl.BlockSpec((1, nh), lambda k: (0, 0)),     # fc1 bias
            pl.BlockSpec((1, nh), lambda k: (0, 0)),     # bn gamma
            pl.BlockSpec((1, nh), lambda k: (0, 0)),     # bn beta
            pl.BlockSpec((nh, nc), lambda k: (0, 0)),    # fc2 weight
        ],
        out_specs=pl.BlockSpec((n, nc), lambda k: (0, 0)),
        scratch_shapes=[pltpu.VMEM((n, nh), jnp.float32)],
        compiler_params=pltpu.CompilerParams(
            dimension_semantics=("arbitrary",),
            vmem_limit_bytes=32 * 1024 * 1024),
    )(x_p, w1_p,
      b1.reshape(1, nh).astype(jnp.float32),
      gamma.reshape(1, nh).astype(jnp.float32),
      beta.reshape(1, nh).astype(jnp.float32),
      w2.astype(jnp.float32))


# ------------------------------ forward -----------------------------------
def identification_forward(params, x_nchw):
    """Reproduces Identification.forward(x) (targets=False path): returns probs."""
    h = fused_conv(x_nchw, params["w_conv1"], params["b_conv1"],
                   params["w_conv2"], params["b_conv2"])       # (N, S-4, S-4)
    n = h.shape[0]
    flat = h.reshape(n, -1)   # matches torch .view(A, -1): conv2 has 1 channel
    return fc_head(flat, params["w_fc1"], params["b_fc1"],
                   params["bn_gamma"], params["bn_beta"], params["w_fc2"])


# ---------------------------- deterministic init ---------------------------
def init_params(key, spatial, n_hidden, n_classes):
    fc_in = (spatial - 4) ** 2   # module hardcodes 124*124 for 128x128 inputs
    ks = jax.random.split(key, 7)

    def unif(k, shape, fan_in):
        bound = 1.0 / jnp.sqrt(float(fan_in))
        return jax.random.uniform(k, shape, jnp.float32, -bound, bound)

    return {
        "w_conv1": unif(ks[0], (16, 3, 3, 3), 3 * 9),      # OIHW (torch layout)
        "b_conv1": unif(ks[1], (16,), 3 * 9),
        "w_conv2": unif(ks[2], (1, 16, 3, 3), 16 * 9),     # OIHW
        "b_conv2": unif(ks[3], (1,), 16 * 9),
        "w_fc1": unif(ks[4], (n_hidden, fc_in), fc_in).T,  # (in, out)
        "b_fc1": unif(ks[5], (n_hidden,), fc_in),
        "bn_gamma": jnp.ones((n_hidden,), jnp.float32),
        "bn_beta": jnp.zeros((n_hidden,), jnp.float32),
        "w_fc2": unif(ks[6], (n_classes, n_hidden), n_hidden).T,  # no bias
    }


if __name__ == "__main__":
    # Small stand-in shapes: 32x32 images instead of 128x128, so the fc input
    # dim is (32-4)^2 = 784 instead of 124*124.  n_hidden = 200 as in the module.
    BATCH, SPATIAL, N_HIDDEN, N_CLASSES = 2, 32, 200, 2

    key = jax.random.PRNGKey(0)
    kp, kx = jax.random.split(key)
    params = init_params(kp, SPATIAL, N_HIDDEN, N_CLASSES)
    x = jax.random.uniform(kx, (BATCH, 3, SPATIAL, SPATIAL), dtype=jnp.float32)

    fwd = jax.jit(identification_forward)
    probs = jax.block_until_ready(fwd(params, x))

    assert probs.shape == (BATCH, N_CLASSES)
    assert bool(jnp.all(jnp.isfinite(probs)))
    assert bool(jnp.allclose(jnp.sum(probs, axis=1), 1.0, atol=1e-5))
    print("KERNEL_OK")
</pallas_src>

<mosaic_0001>
module attributes {stable_mosaic.version = 11 : i64} {
  func.func @_conv5x5_kernel(%arg0: i32, %arg1: memref<1x3x32x32xf32, #tpu.memory_space<vmem>>, %arg2: memref<75xf32, #tpu.memory_space<smem>>, %arg3: memref<1xf32, #tpu.memory_space<smem>>, %arg4: memref<1x28x28xf32, #tpu.memory_space<vmem>>) attributes {dimension_semantics = [#tpu.dimension_semantics<parallel>], iteration_bounds = array<i64: 2>, scalar_prefetch = 0 : i64, scratch_operands = 0 : i64, tpu.core_type = #tpu.core_type<tc>, window_params = [{transform_indices = @transform_0, window_bounds = array<i64: 1, 3, 32, 32>}, {transform_indices = @transform_1, window_bounds = array<i64: 75>}, {transform_indices = @transform_2, window_bounds = array<i64: 1>}, {transform_indices = @transform_3, window_bounds = array<i64: 1, 28, 28>}]} {
    %c0 = arith.constant 0 : index
    %c0_0 = arith.constant 0 : index
    %c0_1 = arith.constant 0 : index
    %c0_2 = arith.constant 0 : index
    %0 = vector.load %arg1[%c0, %c0_0, %c0_1, %c0_2] : memref<1x3x32x32xf32, #tpu.memory_space<vmem>>, vector<1x1x32x32xf32>
    %1 = vector.shape_cast %0 : vector<1x1x32x32xf32> to vector<32x32xf32>
    %c0_3 = arith.constant 0 : index
    %c1 = arith.constant 1 : index
    %c0_4 = arith.constant 0 : index
    %c0_5 = arith.constant 0 : index
    %2 = vector.load %arg1[%c0_3, %c1, %c0_4, %c0_5] : memref<1x3x32x32xf32, #tpu.memory_space<vmem>>, vector<1x1x32x32xf32>
    %3 = vector.shape_cast %2 : vector<1x1x32x32xf32> to vector<32x32xf32>
    %c0_6 = arith.constant 0 : index
    %c2 = arith.constant 2 : index
    %c0_7 = arith.constant 0 : index
    %c0_8 = arith.constant 0 : index
    %4 = vector.load %arg1[%c0_6, %c2, %c0_7, %c0_8] : memref<1x3x32x32xf32, #tpu.memory_space<vmem>>, vector<1x1x32x32xf32>
    %5 = vector.shape_cast %4 : vector<1x1x32x32xf32> to vector<32x32xf32>
    %cst = arith.constant 0.000000e+00 : f32
    %6 = vector.broadcast %cst : f32 to vector<28x28xf32>
    %c0_9 = arith.constant 0 : index
    %7 = memref.load %arg2[%c0_9] : memref<75xf32, #tpu.memory_space<smem>>
    %8 = vector.broadcast %7 : f32 to vector<32x32xf32>
    %9 = arith.mulf %8, %1 : vector<32x32xf32>
    %c25 = arith.constant 25 : index
    %10 = memref.load %arg2[%c25] : memref<75xf32, #tpu.memory_space<smem>>
    %11 = vector.broadcast %10 : f32 to vector<32x32xf32>
    %12 = arith.mulf %11, %3 : vector<32x32xf32>
    %13 = arith.addf %9, %12 : vector<32x32xf32>
    %c50 = arith.constant 50 : index
    %14 = memref.load %arg2[%c50] : memref<75xf32, #tpu.memory_space<smem>>
    %15 = vector.broadcast %14 : f32 to vector<32x32xf32>
    %16 = arith.mulf %15, %5 : vector<32x32xf32>
    %17 = arith.addf %13, %16 : vector<32x32xf32>
    %18 = vector.extract_strided_slice %17 {offsets = [0, 0], sizes = [28, 28], strides = [1, 1]} : vector<32x32xf32> to vector<28x28xf32>
    %19 = arith.addf %6, %18 : vector<28x28xf32>
    %c1_10 = arith.constant 1 : index
    %20 = memref.load %arg2[%c1_10] : memref<75xf32, #tpu.memory_space<smem>>
    %21 = vector.broadcast %20 : f32 to vector<32x32xf32>
    %22 = arith.mulf %21, %1 : vector<32x32xf32>
    %c26 = arith.constant 26 : index
    %23 = memref.load %arg2[%c26] : memref<75xf32, #tpu.memory_space<smem>>
    %24 = vector.broadcast %23 : f32 to vector<32x32xf32>
    %25 = arith.mulf %24, %3 : vector<32x32xf32>
    %26 = arith.addf %22, %25 : vector<32x32xf32>
    %c51 = arith.constant 51 : index
    %27 = memref.load %arg2[%c51] : memref<75xf32, #tpu.memory_space<smem>>
    %28 = vector.broadcast %27 : f32 to vector<32x32xf32>
    %29 = arith.mulf %28, %5 : vector<32x32xf32>
    %30 = arith.addf %26, %29 : vector<32x32xf32>
    %31 = vector.extract_strided_slice %30 {offsets = [0, 1], sizes = [28, 28], strides = [1, 1]} : vector<32x32xf32> to vector<28x28xf32>
    %32 = arith.addf %19, %31 : vector<28x28xf32>
    %c2_11 = arith.constant 2 : index
    %33 = memref.load %arg2[%c2_11] : memref<75xf32, #tpu.memory_space<smem>>
    %34 = vector.broadcast %33 : f32 to vector<32x32xf32>
    %35 = arith.mulf %34, %1 : vector<32x32xf32>
    %c27 = arith.constant 27 : index
    %36 = memref.load %arg2[%c27] : memref<75xf32, #tpu.memory_space<smem>>
    %37 = vector.broadcast %36 : f32 to vector<32x32xf32>
    %38 = arith.mulf %37, %3 : vector<32x32xf32>
    %39 = arith.addf %35, %38 : vector<32x32xf32>
    %c52 = arith.constant 52 : index
    %40 = memref.load %arg2[%c52] : memref<75xf32, #tpu.memory_space<smem>>
    %41 = vector.broadcast %40 : f32 to vector<32x32xf32>
    %42 = arith.mulf %41, %5 : vector<32x32xf32>
    %43 = arith.addf %39, %42 : vector<32x32xf32>
    %44 = vector.extract_strided_slice %43 {offsets = [0, 2], sizes = [28, 28], strides = [1, 1]} : vector<32x32xf32> to vector<28x28xf32>
    %45 = arith.addf %32, %44 : vector<28x28xf32>
    %c3 = arith.constant 3 : index
    %46 = memref.load %arg2[%c3] : memref<75xf32, #tpu.memory_space<smem>>
    %47 = vector.broadcast %46 : f32 to vector<32x32xf32>
    %48 = arith.mulf %47, %1 : vector<32x32xf32>
    %c28 = arith.constant 28 : index
    %49 = memref.load %arg2[%c28] : memref<75xf32, #tpu.memory_space<smem>>
    %50 = vector.broadcast %49 : f32 to vector<32x32xf32>
    %51 = arith.mulf %50, %3 : vector<32x32xf32>
    %52 = arith.addf %48, %51 : vector<32x32xf32>
    %c53 = arith.constant 53 : index
    %53 = memref.load %arg2[%c53] : memref<75xf32, #tpu.memory_space<smem>>
    %54 = vector.broadcast %53 : f32 to vector<32x32xf32>
    %55 = arith.mulf %54, %5 : vector<32x32xf32>
    %56 = arith.addf %52, %55 : vector<32x32xf32>
    %57 = vector.extract_strided_slice %56 {offsets = [0, 3], sizes = [28, 28], strides = [1, 1]} : vector<32x32xf32> to vector<28x28xf32>
    %58 = arith.addf %45, %57 : vector<28x28xf32>
    %c4 = arith.constant 4 : index
    %59 = memref.load %arg2[%c4] : memref<75xf32, #tpu.memory_space<smem>>
    %60 = vector.broadcast %59 : f32 to vector<32x32xf32>
    %61 = arith.mulf %60, %1 : vector<32x32xf32>
    %c29 = arith.constant 29 : index
    %62 = memref.load %arg2[%c29] : memref<75xf32, #tpu.memory_space<smem>>
    %63 = vector.broadcast %62 : f32 to vector<32x32xf32>
    %64 = arith.mulf %63, %3 : vector<32x32xf32>
    %65 = arith.addf %61, %64 : vector<32x32xf32>
    %c54 = arith.constant 54 : index
    %66 = memref.load %arg2[%c54] : memref<75xf32, #tpu.memory_space<smem>>
    %67 = vector.broadcast %66 : f32 to vector<32x32xf32>
    %68 = arith.mulf %67, %5 : vector<32x32xf32>
    %69 = arith.addf %65, %68 : vector<32x32xf32>
    %70 = vector.extract_strided_slice %69 {offsets = [0, 4], sizes = [28, 28], strides = [1, 1]} : vector<32x32xf32> to vector<28x28xf32>
    %71 = arith.addf %58, %70 : vector<28x28xf32>
    %c5 = arith.constant 5 : index
    %72 = memref.load %arg2[%c5] : memref<75xf32, #tpu.memory_space<smem>>
    %73 = vector.broadcast %72 : f32 to vector<32x32xf32>
    %74 = arith.mulf %73, %1 : vector<32x32xf32>
    %c30 = arith.constant 30 : index
    %75 = memref.load %arg2[%c30] : memref<75xf32, #tpu.memory_space<smem>>
    %76 = vector.broadcast %75 : f32 to vector<32x32xf32>
    %77 = arith.mulf %76, %3 : vector<32x32xf32>
    %78 = arith.addf %74, %77 : vector<32x32xf32>
    %c55 = arith.constant 55 : index
    %79 = memref.load %arg2[%c55] : memref<75xf32, #tpu.memory_space<smem>>
    %80 = vector.broadcast %79 : f32 to vector<32x32xf32>
    %81 = arith.mulf %80, %5 : vector<32x32xf32>
    %82 = arith.addf %78, %81 : vector<32x32xf32>
    %83 = vector.extract_strided_slice %82 {offsets = [1, 0], sizes = [28, 28], strides = [1, 1]} : vector<32x32xf32> to vector<28x28xf32>
    %84 = arith.addf %71, %83 : vector<28x28xf32>
    %c6 = arith.constant 6 : index
    %85 = memref.load %arg2[%c6] : memref<75xf32, #tpu.memory_space<smem>>
    %86 = vector.broadcast %85 : f32 to vector<32x32xf32>
    %87 = arith.mulf %86, %1 : vector<32x32xf32>
    %c31 = arith.constant 31 : index
    %88 = memref.load %arg2[%c31] : memref<75xf32, #tpu.memory_space<smem>>
    %89 = vector.broadcast %88 : f32 to vector<32x32xf32>
    %90 = arith.mulf %89, %3 : vector<32x32xf32>
    %91 = arith.addf %87, %90 : vector<32x32xf32>
    %c56 = arith.constant 56 : index
    %92 = memref.load %arg2[%c56] : memref<75xf32, #tpu.memory_space<smem>>
    %93 = vector.broadcast %92 : f32 to vector<32x32xf32>
    %94 = arith.mulf %93, %5 : vector<32x32xf32>
    %95 = arith.addf %91, %94 : vector<32x32xf32>
    %96 = vector.extract_strided_slice %95 {offsets = [1, 1], sizes = [28, 28], strides = [1, 1]} : vector<32x32xf32> to vector<28x28xf32>
    %97 = arith.addf %84, %96 : vector<28x28xf32>
    %c7 = arith.constant 7 : index
    %98 = memref.load %arg2[%c7] : memref<75xf32, #tpu.memory_space<smem>>
    %99 = vector.broadcast %98 : f32 to vector<32x32xf32>
    %100 = arith.mulf %99, %1 : vector<32x32xf32>
    %c32 = arith.constant 32 : index
    %101 = memref.load %arg2[%c32] : memref<75xf32, #tpu.memory_space<smem>>
    %102 = vector.broadcast %101 : f32 to vector<32x32xf32>
    %103 = arith.mulf %102, %3 : vector<32x32xf32>
    %104 = arith.addf %100, %103 : vector<32x32xf32>
    %c57 = arith.constant 57 : index
    %105 = memref.load %arg2[%c57] : memref<75xf32, #tpu.memory_space<smem>>
    %106 = vector.broadcast %105 : f32 to vector<32x32xf32>
    %107 = arith.mulf %106, %5 : vector<32x32xf32>
    %108 = arith.addf %104, %107 : vector<32x32xf32>
    %109 = vector.extract_strided_slice %108 {offsets = [1, 2], sizes = [28, 28], strides = [1, 1]} : vector<32x32xf32> to vector<28x28xf32>
    %110 = arith.addf %97, %109 : vector<28x28xf32>
    %c8 = arith.constant 8 : index
    %111 = memref.load %arg2[%c8] : memref<75xf32, #tpu.memory_space<smem>>
    %112 = vector.broadcast %111 : f32 to vector<32x32xf32>
    %113 = arith.mulf %112, %1 : vector<32x32xf32>
    %c33 = arith.constant 33 : index
    %114 = memref.load %arg2[%c33] : memref<75xf32, #tpu.memory_space<smem>>
    %115 = vector.broadcast %114 : f32 to vector<32x32xf32>
    %116 = arith.mulf %115, %3 : vector<32x32xf32>
    %117 = arith.addf %113, %116 : vector<32x32xf32>
    %c58 = arith.constant 58 : index
    %118 = memref.load %arg2[%c58] : memref<75xf32, #tpu.memory_space<smem>>
    %119 = vector.broadcast %118 : f32 to vector<32x32xf32>
    %120 = arith.mulf %119, %5 : vector<32x32xf32>
    %121 = arith.addf %117, %120 : vector<32x32xf32>
    %122 = vector.extract_strided_slice %121 {offsets = [1, 3], sizes = [28, 28], strides = [1, 1]} : vector<32x32xf32> to vector<28x28xf32>
    %123 = arith.addf %110, %122 : vector<28x28xf32>
    %c9 = arith.constant 9 : index
    %124 = memref.load %arg2[%c9] : memref<75xf32, #tpu.memory_space<smem>>
    %125 = vector.broadcast %124 : f32 to vector<32x32xf32>
    %126 = arith.mulf %125, %1 : vector<32x32xf32>
    %c34 = arith.constant 34 : index
    %127 = memref.load %arg2[%c34] : memref<75xf32, #tpu.memory_space<smem>>
    %128 = vector.broadcast %127 : f32 to vector<32x32xf32>
    %129 = arith.mulf %128, %3 : vector<32x32xf32>
    %130 = arith.addf %126, %129 : vector<32x32xf32>
    %c59 = arith.constant 59 : index
    %131 = memref.load %arg2[%c59] : memref<75xf32, #tpu.memory_space<smem>>
    %132 = vector.broadcast %131 : f32 to vector<32x32xf32>
    %133 = arith.mulf %132, %5 : vector<32x32xf32>
    %134 = arith.addf %130, %133 : vector<32x32xf32>
    %135 = vector.extract_strided_slice %134 {offsets = [1, 4], sizes = [28, 28], strides = [1, 1]} : vector<32x32xf32> to vector<28x28xf32>
    %136 = arith.addf %123, %135 : vector<28x28xf32>
    %c10 = arith.constant 10 : index
    %137 = memref.load %arg2[%c10] : memref<75xf32, #tpu.memory_space<smem>>
    %138 = vector.broadcast %137 : f32 to vector<32x32xf32>
    %139 = arith.mulf %138, %1 : vector<32x32xf32>
    %c35 = arith.constant 35 : index
    %140 = memref.load %arg2[%c35] : memref<75xf32, #tpu.memory_space<smem>>
    %141 = vector.broadcast %140 : f32 to vector<32x32xf32>
    %142 = arith.mulf %141, %3 : vector<32x32xf32>
    %143 = arith.addf %139, %142 : vector<32x32xf32>
    %c60 = arith.constant 60 : index
    %144 = memref.load %arg2[%c60] : memref<75xf32, #tpu.memory_space<smem>>
    %145 = vector.broadcast %144 : f32 to vector<32x32xf32>
    %146 = arith.mulf %145, %5 : vector<32x32xf32>
    %147 = arith.addf %143, %146 : vector<32x32xf32>
    %148 = vector.extract_strided_slice %147 {offsets = [2, 0], sizes = [28, 28], strides = [1, 1]} : vector<32x32xf32> to vector<28x28xf32>
    %149 = arith.addf %136, %148 : vector<28x28xf32>
    %c11 = arith.constant 11 : index
    %150 = memref.load %arg2[%c11] : memref<75xf32, #tpu.memory_space<smem>>
    %151 = vector.broadcast %150 : f32 to vector<32x32xf32>
    %152 = arith.mulf %151, %1 : vector<32x32xf32>
    %c36 = arith.constant 36 : index
    %153 = memref.load %arg2[%c36] : memref<75xf32, #tpu.memory_space<smem>>
    %154 = vector.broadcast %153 : f32 to vector<32x32xf32>
    %155 = arith.mulf %154, %3 : vector<32x32xf32>
    %156 = arith.addf %152, %155 : vector<32x32xf32>
    %c61 = arith.constant 61 : index
    %157 = memref.load %arg2[%c61] : memref<75xf32, #tpu.memory_space<smem>>
    %158 = vector.broadcast %157 : f32 to vector<32x32xf32>
    %159 = arith.mulf %158, %5 : vector<32x32xf32>
    %160 = arith.addf %156, %159 : vector<32x32xf32>
    %161 = vector.extract_strided_slice %160 {offsets = [2, 1], sizes = [28, 28], strides = [1, 1]} : vector<32x32xf32> to vector<28x28xf32>
    %162 = arith.addf %149, %161 : vector<28x28xf32>
    %c12 = arith.constant 12 : index
    %163 = memref.load %arg2[%c12] : memref<75xf32, #tpu.memory_space<smem>>
    %164 = vector.broadcast %163 : f32 to vector<32x32xf32>
    %165 = arith.mulf %164, %1 : vector<32x32xf32>
    %c37 = arith.constant 37 : index
    %166 = memref.load %arg2[%c37] : memref<75xf32, #tpu.memory_space<smem>>
    %167 = vector.broadcast %166 : f32 to vector<32x32xf32>
    %168 = arith.mulf %167, %3 : vector<32x32xf32>
    %169 = arith.addf %165, %168 : vector<32x32xf32>
    %c62 = arith.constant 62 : index
    %170 = memref.load %arg2[%c62] : memref<75xf32, #tpu.memory_space<smem>>
    %171 = vector.broadcast %170 : f32 to vector<32x32xf32>
    %172 = arith.mulf %171, %5 : vector<32x32xf32>
    %173 = arith.addf %169, %172 : vector<32x32xf32>
    %174 = vector.extract_strided_slice %173 {offsets = [2, 2], sizes = [28, 28], strides = [1, 1]} : vector<32x32xf32> to vector<28x28xf32>
    %175 = arith.addf %162, %174 : vector<28x28xf32>
    %c13 = arith.constant 13 : index
    %176 = memref.load %arg2[%c13] : memref<75xf32, #tpu.memory_space<smem>>
    %177 = vector.broadcast %176 : f32 to vector<32x32xf32>
    %178 = arith.mulf %177, %1 : vector<32x32xf32>
    %c38 = arith.constant 38 : index
    %179 = memref.load %arg2[%c38] : memref<75xf32, #tpu.memory_space<smem>>
    %180 = vector.broadcast %179 : f32 to vector<32x32xf32>
    %181 = arith.mulf %180, %3 : vector<32x32xf32>
    %182 = arith.addf %178, %181 : vector<32x32xf32>
    %c63 = arith.constant 63 : index
    %183 = memref.load %arg2[%c63] : memref<75xf32, #tpu.memory_space<smem>>
    %184 = vector.broadcast %183 : f32 to vector<32x32xf32>
    %185 = arith.mulf %184, %5 : vector<32x32xf32>
    %186 = arith.addf %182, %185 : vector<32x32xf32>
    %187 = vector.extract_strided_slice %186 {offsets = [2, 3], sizes = [28, 28], strides = [1, 1]} : vector<32x32xf32> to vector<28x28xf32>
    %188 = arith.addf %175, %187 : vector<28x28xf32>
    %c14 = arith.constant 14 : index
    %189 = memref.load %arg2[%c14] : memref<75xf32, #tpu.memory_space<smem>>
    %190 = vector.broadcast %189 : f32 to vector<32x32xf32>
    %191 = arith.mulf %190, %1 : vector<32x32xf32>
    %c39 = arith.constant 39 : index
    %192 = memref.load %arg2[%c39] : memref<75xf32, #tpu.memory_space<smem>>
    %193 = vector.broadcast %192 : f32 to vector<32x32xf32>
    %194 = arith.mulf %193, %3 : vector<32x32xf32>
    %195 = arith.addf %191, %194 : vector<32x32xf32>
    %c64 = arith.constant 64 : index
    %196 = memref.load %arg2[%c64] : memref<75xf32, #tpu.memory_space<smem>>
    %197 = vector.broadcast %196 : f32 to vector<32x32xf32>
    %198 = arith.mulf %197, %5 : vector<32x32xf32>
    %199 = arith.addf %195, %198 : vector<32x32xf32>
    %200 = vector.extract_strided_slice %199 {offsets = [2, 4], sizes = [28, 28], strides = [1, 1]} : vector<32x32xf32> to vector<28x28xf32>
    %201 = arith.addf %188, %200 : vector<28x28xf32>
    %c15 = arith.constant 15 : index
    %202 = memref.load %arg2[%c15] : memref<75xf32, #tpu.memory_space<smem>>
    %203 = vector.broadcast %202 : f32 to vector<32x32xf32>
    %204 = arith.mulf %203, %1 : vector<32x32xf32>
    %c40 = arith.constant 40 : index
    %205 = memref.load %arg2[%c40] : memref<75xf32, #tpu.memory_space<smem>>
    %206 = vector.broadcast %205 : f32 to vector<32x32xf32>
    %207 = arith.mulf %206, %3 : vector<32x32xf32>
    %208 = arith.addf %204, %207 : vector<32x32xf32>
    %c65 = arith.constant 65 : index
    %209 = memref.load %arg2[%c65] : memref<75xf32, #tpu.memory_space<smem>>
    %210 = vector.broadcast %209 : f32 to vector<32x32xf32>
    %211 = arith.mulf %210, %5 : vector<32x32xf32>
    %212 = arith.addf %208, %211 : vector<32x32xf32>
    %213 = vector.extract_strided_slice %212 {offsets = [3, 0], sizes = [28, 28], strides = [1, 1]} : vector<32x32xf32> to vector<28x28xf32>
    %214 = arith.addf %201, %213 : vector<28x28xf32>
    %c16 = arith.constant 16 : index
    %215 = memref.load %arg2[%c16] : memref<75xf32, #tpu.memory_space<smem>>
    %216 = vector.broadcast %215 : f32 to vector<32x32xf32>
    %217 = arith.mulf %216, %1 : vector<32x32xf32>
    %c41 = arith.constant 41 : index
    %218 = memref.load %arg2[%c41] : memref<75xf32, #tpu.memory_space<smem>>
    %219 = vector.broadcast %218 : f32 to vector<32x32xf32>
    %220 = arith.mulf %219, %3 : vector<32x32xf32>
    %221 = arith.addf %217, %220 : vector<32x32xf32>
    %c66 = arith.constant 66 : index
    %222 = memref.load %arg2[%c66] : memref<75xf32, #tpu.memory_space<smem>>
    %223 = vector.broadcast %222 : f32 to vector<32x32xf32>
    %224 = arith.mulf %223, %5 : vector<32x32xf32>
    %225 = arith.addf %221, %224 : vector<32x32xf32>
    %226 = vector.extract_strided_slice %225 {offsets = [3, 1], sizes = [28, 28], strides = [1, 1]} : vector<32x32xf32> to vector<28x28xf32>
    %227 = arith.addf %214, %226 : vector<28x28xf32>
    %c17 = arith.constant 17 : index
    %228 = memref.load %arg2[%c17] : memref<75xf32, #tpu.memory_space<smem>>
    %229 = vector.broadcast %228 : f32 to vector<32x32xf32>
    %230 = arith.mulf %229, %1 : vector<32x32xf32>
    %c42 = arith.constant 42 : index
    %231 = memref.load %arg2[%c42] : memref<75xf32, #tpu.memory_space<smem>>
    %232 = vector.broadcast %231 : f32 to vector<32x32xf32>
    %233 = arith.mulf %232, %3 : vector<32x32xf32>
    %234 = arith.addf %230, %233 : vector<32x32xf32>
    %c67 = arith.constant 67 : index
    %235 = memref.load %arg2[%c67] : memref<75xf32, #tpu.memory_space<smem>>
    %236 = vector.broadcast %235 : f32 to vector<32x32xf32>
    %237 = arith.mulf %236, %5 : vector<32x32xf32>
    %238 = arith.addf %234, %237 : vector<32x32xf32>
    %239 = vector.extract_strided_slice %238 {offsets = [3, 2], sizes = [28, 28], strides = [1, 1]} : vector<32x32xf32> to vector<28x28xf32>
    %240 = arith.addf %227, %239 : vector<28x28xf32>
    %c18 = arith.constant 18 : index
    %241 = memref.load %arg2[%c18] : memref<75xf32, #tpu.memory_space<smem>>
    %242 = vector.broadcast %241 : f32 to vector<32x32xf32>
    %243 = arith.mulf %242, %1 : vector<32x32xf32>
    %c43 = arith.constant 43 : index
    %244 = memref.load %arg2[%c43] : memref<75xf32, #tpu.memory_space<smem>>
    %245 = vector.broadcast %244 : f32 to vector<32x32xf32>
    %246 = arith.mulf %245, %3 : vector<32x32xf32>
    %247 = arith.addf %243, %246 : vector<32x32xf32>
    %c68 = arith.constant 68 : index
    %248 = memref.load %arg2[%c68] : memref<75xf32, #tpu.memory_space<smem>>
    %249 = vector.broadcast %248 : f32 to vector<32x32xf32>
    %250 = arith.mulf %249, %5 : vector<32x32xf32>
    %251 = arith.addf %247, %250 : vector<32x32xf32>
    %252 = vector.extract_strided_slice %251 {offsets = [3, 3], sizes = [28, 28], strides = [1, 1]} : vector<32x32xf32> to vector<28x28xf32>
    %253 = arith.addf %240, %252 : vector<28x28xf32>
    %c19 = arith.constant 19 : index
    %254 = memref.load %arg2[%c19] : memref<75xf32, #tpu.memory_space<smem>>
    %255 = vector.broadcast %254 : f32 to vector<32x32xf32>
    %256 = arith.mulf %255, %1 : vector<32x32xf32>
    %c44 = arith.constant 44 : index
    %257 = memref.load %arg2[%c44] : memref<75xf32, #tpu.memory_space<smem>>
    %258 = vector.broadcast %257 : f32 to vector<32x32xf32>
    %259 = arith.mulf %258, %3 : vector<32x32xf32>
    %260 = arith.addf %256, %259 : vector<32x32xf32>
    %c69 = arith.constant 69 : index
    %261 = memref.load %arg2[%c69] : memref<75xf32, #tpu.memory_space<smem>>
    %262 = vector.broadcast %261 : f32 to vector<32x32xf32>
    %263 = arith.mulf %262, %5 : vector<32x32xf32>
    %264 = arith.addf %260, %263 : vector<32x32xf32>
    %265 = vector.extract_strided_slice %264 {offsets = [3, 4], sizes = [28, 28], strides = [1, 1]} : vector<32x32xf32> to vector<28x28xf32>
    %266 = arith.addf %253, %265 : vector<28x28xf32>
    %c20 = arith.constant 20 : index
    %267 = memref.load %arg2[%c20] : memref<75xf32, #tpu.memory_space<smem>>
    %268 = vector.broadcast %267 : f32 to vector<32x32xf32>
    %269 = arith.mulf %268, %1 : vector<32x32xf32>
    %c45 = arith.constant 45 : index
    %270 = memref.load %arg2[%c45] : memref<75xf32, #tpu.memory_space<smem>>
    %271 = vector.broadcast %270 : f32 to vector<32x32xf32>
    %272 = arith.mulf %271, %3 : vector<32x32xf32>
    %273 = arith.addf %269, %272 : vector<32x32xf32>
    %c70 = arith.constant 70 : index
    %274 = memref.load %arg2[%c70] : memref<75xf32, #tpu.memory_space<smem>>
    %275 = vector.broadcast %274 : f32 to vector<32x32xf32>
    %276 = arith.mulf %275, %5 : vector<32x32xf32>
    %277 = arith.addf %273, %276 : vector<32x32xf32>
    %278 = vector.extract_strided_slice %277 {offsets = [4, 0], sizes = [28, 28], strides = [1, 1]} : vector<32x32xf32> to vector<28x28xf32>
    %279 = arith.addf %266, %278 : vector<28x28xf32>
    %c21 = arith.constant 21 : index
    %280 = memref.load %arg2[%c21] : memref<75xf32, #tpu.memory_space<smem>>
    %281 = vector.broadcast %280 : f32 to vector<32x32xf32>
    %282 = arith.mulf %281, %1 : vector<32x32xf32>
    %c46 = arith.constant 46 : index
    %283 = memref.load %arg2[%c46] : memref<75xf32, #tpu.memory_space<smem>>
    %284 = vector.broadcast %283 : f32 to vector<32x32xf32>
    %285 = arith.mulf %284, %3 : vector<32x32xf32>
    %286 = arith.addf %282, %285 : vector<32x32xf32>
    %c71 = arith.constant 71 : index
    %287 = memref.load %arg2[%c71] : memref<75xf32, #tpu.memory_space<smem>>
    %288 = vector.broadcast %287 : f32 to vector<32x32xf32>
    %289 = arith.mulf %288, %5 : vector<32x32xf32>
    %290 = arith.addf %286, %289 : vector<32x32xf32>
    %291 = vector.extract_strided_slice %290 {offsets = [4, 1], sizes = [28, 28], strides = [1, 1]} : vector<32x32xf32> to vector<28x28xf32>
    %292 = arith.addf %279, %291 : vector<28x28xf32>
    %c22 = arith.constant 22 : index
    %293 = memref.load %arg2[%c22] : memref<75xf32, #tpu.memory_space<smem>>
    %294 = vector.broadcast %293 : f32 to vector<32x32xf32>
    %295 = arith.mulf %294, %1 : vector<32x32xf32>
    %c47 = arith.constant 47 : index
    %296 = memref.load %arg2[%c47] : memref<75xf32, #tpu.memory_space<smem>>
    %297 = vector.broadcast %296 : f32 to vector<32x32xf32>
    %298 = arith.mulf %297, %3 : vector<32x32xf32>
    %299 = arith.addf %295, %298 : vector<32x32xf32>
    %c72 = arith.constant 72 : index
    %300 = memref.load %arg2[%c72] : memref<75xf32, #tpu.memory_space<smem>>
    %301 = vector.broadcast %300 : f32 to vector<32x32xf32>
    %302 = arith.mulf %301, %5 : vector<32x32xf32>
    %303 = arith.addf %299, %302 : vector<32x32xf32>
    %304 = vector.extract_strided_slice %303 {offsets = [4, 2], sizes = [28, 28], strides = [1, 1]} : vector<32x32xf32> to vector<28x28xf32>
    %305 = arith.addf %292, %304 : vector<28x28xf32>
    %c23 = arith.constant 23 : index
    %306 = memref.load %arg2[%c23] : memref<75xf32, #tpu.memory_space<smem>>
    %307 = vector.broadcast %306 : f32 to vector<32x32xf32>
    %308 = arith.mulf %307, %1 : vector<32x32xf32>
    %c48 = arith.constant 48 : index
    %309 = memref.load %arg2[%c48] : memref<75xf32, #tpu.memory_space<smem>>
    %310 = vector.broadcast %309 : f32 to vector<32x32xf32>
    %311 = arith.mulf %310, %3 : vector<32x32xf32>
    %312 = arith.addf %308, %311 : vector<32x32xf32>
    %c73 = arith.constant 73 : index
    %313 = memref.load %arg2[%c73] : memref<75xf32, #tpu.memory_space<smem>>
    %314 = vector.broadcast %313 : f32 to vector<32x32xf32>
    %315 = arith.mulf %314, %5 : vector<32x32xf32>
    %316 = arith.addf %312, %315 : vector<32x32xf32>
    %317 = vector.extract_strided_slice %316 {offsets = [4, 3], sizes = [28, 28], strides = [1, 1]} : vector<32x32xf32> to vector<28x28xf32>
    %318 = arith.addf %305, %317 : vector<28x28xf32>
    %c24 = arith.constant 24 : index
    %319 = memref.load %arg2[%c24] : memref<75xf32, #tpu.memory_space<smem>>
    %320 = vector.broadcast %319 : f32 to vector<32x32xf32>
    %321 = arith.mulf %320, %1 : vector<32x32xf32>
    %c49 = arith.constant 49 : index
    %322 = memref.load %arg2[%c49] : memref<75xf32, #tpu.memory_space<smem>>
    %323 = vector.broadcast %322 : f32 to vector<32x32xf32>
    %324 = arith.mulf %323, %3 : vector<32x32xf32>
    %325 = arith.addf %321, %324 : vector<32x32xf32>
    %c74 = arith.constant 74 : index
    %326 = memref.load %arg2[%c74] : memref<75xf32, #tpu.memory_space<smem>>
    %327 = vector.broadcast %326 : f32 to vector<32x32xf32>
    %328 = arith.mulf %327, %5 : vector<32x32xf32>
    %329 = arith.addf %325, %328 : vector<32x32xf32>
    %330 = vector.extract_strided_slice %329 {offsets = [4, 4], sizes = [28, 28], strides = [1, 1]} : vector<32x32xf32> to vector<28x28xf32>
    %331 = arith.addf %318, %330 : vector<28x28xf32>
    %c0_12 = arith.constant 0 : index
    %332 = memref.load %arg3[%c0_12] : memref<1xf32, #tpu.memory_space<smem>>
    %333 = vector.broadcast %332 : f32 to vector<28x28xf32>
    %334 = arith.addf %331, %333 : vector<28x28xf32>
    %c0_13 = arith.constant 0 : index
    %c0_14 = arith.constant 0 : index
    %c0_15 = arith.constant 0 : index
    %335 = vector.load %arg4[%c0_13, %c0_14, %c0_15] : memref<1x28x28xf32, #tpu.memory_space<vmem>>, vector<1x28x28xf32>
    %336 = vector.shape_cast %335 : vector<1x28x28xf32> to vector<28x28xf32>
    %337 = vector.shape_cast %334 : vector<28x28xf32> to vector<1x28x28xf32>
    tpu.vector_store %arg4[%c0_13, %c0_14, %c0_15], %337 {strides = array<i32>} : memref<1x28x28xf32, #tpu.memory_space<vmem>>, vector<1x28x28xf32>,
    return
  }
  func.func @transform_0(%arg0: i32) -> (i32, i32, i32, i32) {
    %c0_i32 = arith.constant 0 : i32
    %c0_i32_0 = arith.constant 0 : i32
    %c0_i32_1 = arith.constant 0 : i32
    %c0_i32_2 = arith.constant 0 : i32
    return %arg0, %c0_i32, %c0_i32_0, %c0_i32_1 : i32, i32, i32, i32
  }
  func.func @transform_1(%arg0: i32) -> i32 {
    %c0_i32 = arith.constant 0 : i32
    %c0_i32_0 = arith.constant 0 : i32
    return %c0_i32 : i32
  }
  func.func @transform_2(%arg0: i32) -> i32 {
    %c0_i32 = arith.constant 0 : i32
    %c0_i32_0 = arith.constant 0 : i32
    return %c0_i32 : i32
  }
  func.func @transform_3(%arg0: i32) -> (i32, i32, i32) {
    %c0_i32 = arith.constant 0 : i32
    %c0_i32_0 = arith.constant 0 : i32
    %c0_i32_1 = arith.constant 0 : i32
    return %arg0, %c0_i32, %c0_i32_0 : i32, i32, i32
  }
}

module attributes {stable_mosaic.version = 11 : i64} {
  func.func @_fc_head_kernel(%arg0: i32, %arg1: memref<2x896xbf16, #tpu.memory_space<vmem>>, %arg2: memref<896x200xbf16, #tpu.memory_space<vmem>>, %arg3: memref<1x200xf32, #tpu.memory_space<vmem>>, %arg4: memref<1x200xf32, #tpu.memory_space<vmem>>, %arg5: memref<1x200xf32, #tpu.memory_space<vmem>>, %arg6: memref<200x2xf32, #tpu.memory_space<vmem>>, %arg7: memref<2x2xf32, #tpu.memory_space<vmem>>, %arg8: memref<2x200xf32, #tpu.memory_space<vmem>>) attributes {dimension_semantics = [#tpu.dimension_semantics<arbitrary>], iteration_bounds = array<i64: 1>, scalar_prefetch = 0 : i64, scratch_operands = 1 : i64, tpu.core_type = #tpu.core_type<tc>, window_params = [{transform_indices = @transform_0, window_bounds = array<i64: 2, 896>}, {transform_indices = @transform_1, window_bounds = array<i64: 896, 200>}, {pipeline_mode = #tpu.pipeline_mode<synchronous>, transform_indices = @transform_2, window_bounds = array<i64: 1, 200>}, {pipeline_mode = #tpu.pipeline_mode<synchronous>, transform_indices = @transform_3, window_bounds = array<i64: 1, 200>}, {pipeline_mode = #tpu.pipeline_mode<synchronous>, transform_indices = @transform_4, window_bounds = array<i64: 1, 200>}, {pipeline_mode = #tpu.pipeline_mode<synchronous>, transform_indices = @transform_5, window_bounds = array<i64: 200, 2>}, {pipeline_mode = #tpu.pipeline_mode<synchronous>, transform_indices = @transform_6, window_bounds = array<i64: 2, 2>}]} {
    %c0_i32 = arith.constant 0 : i32
    %0 = arith.cmpi eq, %arg0, %c0_i32 : i32
    %1 = arith.extui %0 : i1 to i32
    %c0_i32_0 = arith.constant 0 : i32
    %2 = arith.cmpi ne, %1, %c0_i32_0 : i32
    scf.if %2 {
      %cst_10 = arith.constant 0.000000e+00 : f32
      %12 = vector.broadcast %cst_10 : f32 to vector<2x200xf32>
      %c0_11 = arith.constant 0 : index
      %c0_12 = arith.constant 0 : index
      %13 = vector.load %arg8[%c0_11, %c0_12] : memref<2x200xf32, #tpu.memory_space<vmem>>, vector<2x200xf32>
      tpu.vector_store %arg8[%c0_11, %c0_12], %12 {strides = array<i32>} : memref<2x200xf32, #tpu.memory_space<vmem>>, vector<2x200xf32>,
    } else {
    }
    %c0 = arith.constant 0 : index
    %c0_1 = arith.constant 0 : index
    %3 = vector.load %arg8[%c0, %c0_1] : memref<2x200xf32, #tpu.memory_space<vmem>>, vector<2x200xf32>
    %c0_2 = arith.constant 0 : index
    %c0_3 = arith.constant 0 : index
    %4 = vector.load %arg1[%c0_2, %c0_3] : memref<2x896xbf16, #tpu.memory_space<vmem>>, vector<2x896xbf16>
    %c0_4 = arith.constant 0 : index
    %c0_5 = arith.constant 0 : index
    %5 = vector.load %arg2[%c0_4, %c0_5] : memref<896x200xbf16, #tpu.memory_space<vmem>>, vector<896x200xbf16>
    %cst = arith.constant dense<0.000000e+00> : vector<2x200xf32>
    %6 = tpu.matmul %4, %5, %cst {dimension_numbers = #tpu.dot_dimension_numbers<[1], [0], [0], [1], [0, 0, 1, 1], [], []>} : vector<2x896xbf16>, vector<896x200xbf16>, vector<2x200xf32> -> vector<2x200xf32>
    %7 = arith.addf %3, %6 : vector<2x200xf32>
    %c0_6 = arith.constant 0 : index
    %c0_7 = arith.constant 0 : index
    %8 = vector.load %arg8[%c0_6, %c0_7] : memref<2x200xf32, #tpu.memory_space<vmem>>, vector<2x200xf32>
    tpu.vector_store %arg8[%c0_6, %c0_7], %7 {strides = array<i32>} : memref<2x200xf32, #tpu.memory_space<vmem>>, vector<2x200xf32>,
    %c0_i32_8 = arith.constant 0 : i32
    %9 = arith.cmpi eq, %arg0, %c0_i32_8 : i32
    %10 = arith.extui %9 : i1 to i32
    %c0_i32_9 = arith.constant 0 : i32
    %11 = arith.cmpi ne, %10, %c0_i32_9 : i32
    scf.if %11 {
      %c0_10 = arith.constant 0 : index
      %c0_11 = arith.constant 0 : index
      %12 = vector.load %arg8[%c0_10, %c0_11] : memref<2x200xf32, #tpu.memory_space<vmem>>, vector<2x200xf32>
      %c0_12 = arith.constant 0 : index
      %c0_13 = arith.constant 0 : index
      %13 = vector.load %arg3[%c0_12, %c0_13] : memref<1x200xf32, #tpu.memory_space<vmem>>, vector<1x200xf32>
      %14 = vector.broadcast %13 : vector<1x200xf32> to vector<2x200xf32>
      %15 = arith.addf %12, %14 : vector<2x200xf32>
      %16 = math.tanh %15 : vector<2x200xf32>
      %cst_14 = arith.constant dense<0.000000e+00> : vector<200xf32>
      %17 = vector.multi_reduction <add>, %16, %cst_14 [0] : vector<2x200xf32> to vector<200xf32>
      %18 = vector.shape_cast %17 : vector<200xf32> to vector<1x200xf32>
      %cst_15 = arith.constant 2.000000e+00 : f32
      %19 = vector.broadcast %cst_15 : f32 to vector<1x200xf32>
      %20 = arith.divf %18, %19 : vector<1x200xf32>
      %21 = vector.broadcast %20 : vector<1x200xf32> to vector<2x200xf32>
      %22 = arith.subf %16, %21 : vector<2x200xf32>
      %23 = arith.mulf %22, %22 : vector<2x200xf32>
      %cst_16 = arith.constant dense<0.000000e+00> : vector<200xf32>
      %24 = vector.multi_reduction <add>, %23, %cst_16 [0] : vector<2x200xf32> to vector<200xf32>
      %25 = vector.shape_cast %24 : vector<200xf32> to vector<1x200xf32>
      %cst_17 = arith.constant 2.000000e+00 : f32
      %26 = vector.broadcast %cst_17 : f32 to vector<1x200xf32>
      %27 = arith.divf %25, %26 : vector<1x200xf32>
      %28 = vector.broadcast %20 : vector<1x200xf32> to vector<2x200xf32>
      %29 = arith.subf %16, %28 : vector<2x200xf32>
      %cst_18 = arith.constant 9.99999974E-6 : f32
      %30 = vector.broadcast %cst_18 : f32 to vector<1x200xf32>
      %31 = arith.addf %27, %30 : vector<1x200xf32>
      %32 = math.rsqrt %31 : vector<1x200xf32>
      %33 = vector.broadcast %32 : vector<1x200xf32> to vector<2x200xf32>
      %34 = arith.mulf %29, %33 : vector<2x200xf32>
      %c0_19 = arith.constant 0 : index
      %c0_20 = arith.constant 0 : index
      %35 = vector.load %arg4[%c0_19, %c0_20] : memref<1x200xf32, #tpu.memory_space<vmem>>, vector<1x200xf32>
      %36 = vector.broadcast %35 : vector<1x200xf32> to vector<2x200xf32>
      %37 = arith.mulf %34, %36 : vector<2x200xf32>
      %c0_21 = arith.constant 0 : index
      %c0_22 = arith.constant 0 : index
      %38 = vector.load %arg5[%c0_21, %c0_22] : memref<1x200xf32, #tpu.memory_space<vmem>>, vector<1x200xf32>
      %39 = vector.broadcast %38 : vector<1x200xf32> to vector<2x200xf32>
      %40 = arith.addf %37, %39 : vector<2x200xf32>
      %c0_23 = arith.constant 0 : index
      %c0_24 = arith.constant 0 : index
      %41 = vector.load %arg6[%c0_23, %c0_24] : memref<200x2xf32, #tpu.memory_space<vmem>>, vector<200x2xf32>
      %cst_25 = arith.constant dense<0.000000e+00> : vector<2x2xf32>
      %42 = tpu.matmul %40, %41, %cst_25 {dimension_numbers = #tpu.dot_dimension_numbers<[1], [0], [0], [1], [0, 0, 1, 1], [], []>} : vector<2x200xf32>, vector<200x2xf32>, vector<2x2xf32> -> vector<2x2xf32>
      %cst_26 = arith.constant dense<0xFF800000> : vector<2xf32>
      %43 = vector.multi_reduction <maximumf>, %42, %cst_26 [1] : vector<2x2xf32> to vector<2xf32>
      %44 = vector.shape_cast %43 : vector<2xf32> to vector<2x1xf32>
      %45 = vector.broadcast %44 : vector<2x1xf32> to vector<2x2xf32>
      %46 = arith.subf %42, %45 : vector<2x2xf32>
      %47 = math.exp %46 : vector<2x2xf32>
      %cst_27 = arith.constant dense<0.000000e+00> : vector<2xf32>
      %48 = vector.multi_reduction <add>, %47, %cst_27 [1] : vector<2x2xf32> to vector<2xf32>
      %49 = vector.shape_cast %48 : vector<2xf32> to vector<2x1xf32>
      %50 = vector.broadcast %49 : vector<2x1xf32> to vector<2x2xf32>
      %51 = arith.divf %47, %50 : vector<2x2xf32>
      %c0_28 = arith.constant 0 : index
      %c0_29 = arith.constant 0 : index
      %52 = vector.load %arg7[%c0_28, %c0_29] : memref<2x2xf32, #tpu.memory_space<vmem>>, vector<2x2xf32>
      tpu.vector_store %arg7[%c0_28, %c0_29], %51 {strides = array<i32>} : memref<2x2xf32, #tpu.memory_space<vmem>>, vector<2x2xf32>,
    } else {
    }
    return
  }
  func.func @transform_0(%arg0: i32) -> (i32, i32) {
    %c0_i32 = arith.constant 0 : i32
    %c0_i32_0 = arith.constant 0 : i32
    return %c0_i32, %arg0 : i32, i32
  }
  func.func @transform_1(%arg0: i32) -> (i32, i32) {
    %c0_i32 = arith.constant 0 : i32
    %c0_i32_0 = arith.constant 0 : i32
    return %arg0, %c0_i32 : i32, i32
  }
  func.func @transform_2(%arg0: i32) -> (i32, i32) {
    %c0_i32 = arith.constant 0 : i32
    %c0_i32_0 = arith.constant 0 : i32
    %c0_i32_1 = arith.constant 0 : i32
    return %c0_i32, %c0_i32_0 : i32, i32
  }
  func.func @transform_3(%arg0: i32) -> (i32, i32) {
    %c0_i32 = arith.constant 0 : i32
    %c0_i32_0 = arith.constant 0 : i32
    %c0_i32_1 = arith.constant 0 : i32
    return %c0_i32, %c0_i32_0 : i32, i32
  }
  func.func @transform_4(%arg0: i32) -> (i32, i32) {
    %c0_i32 = arith.constant 0 : i32
    %c0_i32_0 = arith.constant 0 : i32
    %c0_i32_1 = arith.constant 0 : i32
    return %c0_i32, %c0_i32_0 : i32, i32
  }
  func.func @transform_5(%arg0: i32) -> (i32, i32) {
    %c0_i32 = arith.constant 0 : i32
    %c0_i32_0 = arith.constant 0 : i32
    %c0_i32_1 = arith.constant 0 : i32
    return %c0_i32, %c0_i32_0 : i32, i32
  }
  func.func @transform_6(%arg0: i32) -> (i32, i32) {
    %c0_i32 = arith.constant 0 : i32
    %c0_i32_0 = arith.constant 0 : i32
    %c0_i32_1 = arith.constant 0 : i32
    return %c0_i32, %c0_i32_0 : i32, i32
  }
}

</mosaic_0001>

<llo_original>
// kernel: identification_forward.2
$region0: #{identification_forward.2}
  #allocation0 [shape = 'u32[]', space=smem, size = 0x4, offset = 0x4, fixed_abs, tag = 'smem constant byte address 0x4 - core index']
  #allocation1 [shape = 'u32[144,128]{1,0:T(1,128)}', space=vmem, size = 0x12000, scoped, tag = 'internal scratch']
  #allocation2 [shape = 'f32[1]{0:T(128)S(6)}', space=smem, size = 0x200, scoped, tag = 'scoped memory for identification_forward.2']
  %s0 = inlined_call_operand.vmem [shape: f32[2,3,32,32], index: 0, kind: input, shape index: {}]
  %s1 = inlined_call_operand.vmem [shape: f32[75], index: 1, kind: input, shape index: {}]
  %s2 = inlined_call_operand.<no memory space> [shape: f32[1], index: 2, kind: input, shape index: {}]
  %s3 = inlined_call_operand.vmem [shape: f32[2,28,28], index: 3, kind: output, shape index: {}]
  %s4 = sld [smem:[#allocation0]]
  $region49: #{identification_forward.2} parent=0
    _
  %s6 = ssub.s32 1, %s4
  %s7 = scalar_select 0, %s6, %s4
  %8 = sst [smem:[#allocation2]] %s2
  $region1: #{identification_forward.2} parent=0
    #allocation3 [shape = 'u8[512]{0}', space=smem, size = 0x200, scoped, tag = 'input window, operand 1, single buffered']
    #allocation4 [shape = 's32[2]{0}', space=sflag, size = 0x8, scoped, tag = 'scoped memory for identification_forward.2']
    %9 = vsyncpa [#allocation4], 0
    loop: start=0, step=1, limit=4
    $region2: #{identification_forward.2} parent=1 // loop_pre_header
      _
    $region3: #{identification_forward.2} parent=1 // loop_header
      %s11 = sphi 0, %s15
      %p12 = scmp.ge.s32.totalorder %s11, 4
      %s21 = sphi 0, %s23
      %s24 = sphi 0, %s21
      %s25 = sphi 0, %s24
      %s41 = sphi 0, %s25
      %s45 = sphi 0, %s45
      %s47 = sphi 0, %s45
      %s48 = sphi 0, %s47
      %s62 = sphi 0, %s48
      %s66 = sphi 0, %s66
      %s68 = sphi 0, %s66
      %s69 = sphi 0, %s68
      %s83 = sphi 0, %s69
      %s89 = sphi 0, %s91
      %s92 = sphi 0, %s89
      %s93 = sphi 0, %s92
      %s109 = sphi 0, %s93
    $region4: #{identification_forward.2} parent=1 // loop_header_branch
      %14 = sbr.rel (%p12) target = $region8
    $region5: #{identification_forward.2} parent=1 // loop_body
      %s16 = ssub.s32 %s11, 1
      %s17 = ssub.s32 %s11, 2
      %s18 = sadd.s32 %s11, 1
      %s19 = ssub.s32 %s11, %s18
      %p20 = scmp.eq.s32.totalorder %s19, 0
      %s22 = sadd.s32 %s21, 1
      %s23 = scalar_select %p20, %s21, %s22
      %p26 = pneg %p20
      %p27 = scmp.eq.s32.totalorder %s11, 1
      %p28 = por %p26, %p27
      %p29 = scmp.ne.s32.totalorder %s21, %s24
      %p30 = scmp.eq.s32.totalorder %s11, 0
      %p31 = por %p29, %p30
      %p32 = scmp.ne.s32.totalorder %s21, %s24
      %p33 = scmp.eq.s32.totalorder %s16, 1
      %p34 = por %p32, %p33
      %p35 = scmp.ne.s32.totalorder %s24, %s25
      %p36 = scmp.eq.s32.totalorder %s16, 0
      %p37 = por %p35, %p36
      %p38 = scmp.ne.s32.totalorder %s24, %s25
      %p39 = scmp.eq.s32.totalorder %s17, 1
      %p40 = por %p38, %p39
      %p42 = scmp.ne.s32.totalorder %s25, %s41
      %p43 = scmp.eq.s32.totalorder %s17, 0
      %p44 = por %p42, %p43
      %s46 = sadd.s32 %s45, 1
      %p49 = scmp.eq.s32.totalorder %s11, 1
      %p50 = scmp.ne.s32.totalorder %s45, %s47
      %p51 = scmp.eq.s32.totalorder %s11, 0
      %p52 = por %p50, %p51
      %p53 = scmp.ne.s32.totalorder %s45, %s47
      %p54 = scmp.eq.s32.totalorder %s16, 1
      %p55 = por %p53, %p54
      %p56 = scmp.ne.s32.totalorder %s47, %s48
      %p57 = scmp.eq.s32.totalorder %s16, 0
      %p58 = por %p56, %p57
      %p59 = scmp.ne.s32.totalorder %s47, %s48
      %p60 = scmp.eq.s32.totalorder %s17, 1
      %p61 = por %p59, %p60
      %p63 = scmp.ne.s32.totalorder %s48, %s62
      %p64 = scmp.eq.s32.totalorder %s17, 0
      %p65 = por %p63, %p64
      %s67 = sadd.s32 %s66, 1
      %p70 = scmp.eq.s32.totalorder %s11, 1
      %p71 = scmp.ne.s32.totalorder %s66, %s68
      %p72 = scmp.eq.s32.totalorder %s11, 0
      %p73 = por %p71, %p72
      %p74 = scmp.ne.s32.totalorder %s66, %s68
      %p75 = scmp.eq.s32.totalorder %s16, 1
      %p76 = por %p74, %p75
      %p77 = scmp.ne.s32.totalorder %s68, %s69
      %p78 = scmp.eq.s32.totalorder %s16, 0
      %p79 = por %p77, %p78
      %p80 = scmp.ne.s32.totalorder %s68, %s69
      %p81 = scmp.eq.s32.totalorder %s17, 1
      %p82 = por %p80, %p81
      %p84 = scmp.ne.s32.totalorder %s69, %s83
      %p85 = scmp.eq.s32.totalorder %s17, 0
      %p86 = por %p84, %p85
      %s87 = ssub.s32 %s11, %s18
      %p88 = scmp.eq.s32.totalorder %s87, 0
      %s90 = sadd.s32 %s89, 1
      %s91 = scalar_select %p88, %s89, %s90
      %p94 = pneg %p88
      %p95 = scmp.eq.s32.totalorder %s11, 1
      %p96 = por %p94, %p95
      %p97 = scmp.ne.s32.totalorder %s89, %s92
      %p98 = scmp.eq.s32.totalorder %s11, 0
      %p99 = por %p97, %p98
      %p100 = scmp.ne.s32.totalorder %s89, %s92
      %p101 = scmp.eq.s32.totalorder %s16, 1
      %p102 = por %p100, %p101
      %p103 = scmp.ne.s32.totalorder %s92, %s93
      %p104 = scmp.eq.s32.totalorder %s16, 0
      %p105 = por %p103, %p104
      %p106 = scmp.ne.s32.totalorder %s92, %s93
      %p107 = scmp.eq.s32.totalorder %s17, 1
      %p108 = por %p106, %p107
      %p110 = scmp.ne.s32.totalorder %s93, %s109
      %p111 = scmp.eq.s32.totalorder %s17, 0
      %p112 = por %p110, %p111
      %p113 = scmp.le.s32.totalorder 1, %s11
      %p114 = scmp.lt.s32.totalorder %s11, 3
      %p115 = pnand %p113, %p114
      %p116 = pneg %p115
      // Predicated region
      $region9: #{identification_forward.2} parent=5 // pred_check
        _
      $region10: #{identification_forward.2} parent=5 // pred_check_branch
        %118 = sbr.rel (%p115) target = $region12
      $region11: #{identification_forward.2} parent=5 // pred_region
        %s119 = ssub.s32 %s11, 1
        // Predicated region
        $region13: #{identification_forward.2} parent=11 // pred_check
          %p120 = pneg %p58
        $region14: #{identification_forward.2} parent=11 // pred_check_branch
          %122 = sbr.rel (%p120) target = $region16
        $region15: #{identification_forward.2} parent=11 // pred_region
          %s124 = ssub.s32 16, 16
          %125 = vsyncadd [#allocation4], %s124
          %s127 = sshll.u32 %s1, 4
          %s128 = int_to_ptr.vmem [resolvable:$true] %s127
          %130 = dma.vmem_to_smem %s128, 16, [#allocation3], [#allocation4]
        $region16: #{identification_forward.2} parent=11 // pred_fallthru
          _
        // Predicated region
        $region17: #{identification_forward.2} parent=11 // pred_check
          %p131 = pneg %p79
        $region18: #{identification_forward.2} parent=11 // pred_check_branch
          %133 = sbr.rel (%p131) target = $region20
        $region19: #{identification_forward.2} parent=11 // pred_region
          _
        $region20: #{identification_forward.2} parent=11 // pred_fallthru
          _
      $region12: #{identification_forward.2} parent=5 // pred_fallthru
        _
      %p134 = scmp.lt.s32.totalorder %s11, 2
      // Predicated region
      $region21: #{identification_forward.2} parent=5 // pred_check
        %p135 = pneg %p134
      $region22: #{identification_forward.2} parent=5 // pred_check_branch
        %137 = sbr.rel (%p135) target = $region24
      $region23: #{identification_forward.2} parent=5 // pred_region
        // Predicated region
        $region25: #{identification_forward.2} parent=23 // pred_check
          %p138 = pneg %p31
        $region26: #{identification_forward.2} parent=23 // pred_check_branch
          %140 = sbr.rel (%p138) target = $region28
        $region27: #{identification_forward.2} parent=23 // pred_region
          %p141 = scmp.lt.s32.totalorder %s11, 1
          %s142 = scalar_select %p141, %s11, 1
          %s143 = smul.addr %s142, 12
          %s144 = smul.addr %s143, 8
          %s145 = scalar_lea.vmem %s0, %s144
        $region28: #{identification_forward.2} parent=23 // pred_fallthru
          _
      $region24: #{identification_forward.2} parent=5 // pred_fallthru
        _
      %p146 = scmp.le.s32.totalorder 1, %s11
      %p147 = scmp.lt.s32.totalorder %s11, 3
      %p148 = pnand %p146, %p147
      %p149 = pneg %p148
      // Predicated region
      $region29: #{identification_forward.2} parent=5 // pred_check
        _
      $region30: #{identification_forward.2} parent=5 // pred_check_branch
        %151 = sbr.rel (%p148) target = $region32
      $region31: #{identification_forward.2} parent=5 // pred_region
        %s152 = ssub.s32 %s11, 1
        // Predicated region
        $region33: #{identification_forward.2} parent=31 // pred_check
          %p153 = pneg %p58
        $region34: #{identification_forward.2} parent=31 // pred_check_branch
          %155 = sbr.rel (%p153) target = $region36
        $region35: #{identification_forward.2} parent=31 // pred_region
          %156 = dma.done [#allocation4], 16
        $region36: #{identification_forward.2} parent=31 // pred_fallthru
          _
        %157 = sfence
        %p158 = scmp.lt.s32.totalorder %s16, 1
        %s159 = scalar_select %p158, %s16, 1
        %s160 = smul.addr %s159, 12
        %s161 = smul.addr %s160, 8
        %s162 = scalar_lea.vmem %s0, %s161
        %p163 = pneg %p37
        %p164 = pneg %p34
        %p165 = pneg %p58
        %p166 = pneg %p55
        %p167 = pneg %p79
        %p168 = pneg %p76
        %p169 = pneg %p105
        %p170 = pneg %p102
        %p171 = scmp.lt.s32.totalorder %s16, 1
        %s172 = scalar_select %p171, %s16, 1
        %s173 = smul.addr %s172, 4
        %s174 = smul.addr %s173, 8
        %s175 = scalar_lea.vmem %s3, %s174
        %p176 = scmp.lt.s32.totalorder %s16, 1
        %s177 = scalar_select %p176, %s16, 1
        %s178 = smul.addr %s177, 12
        %s179 = smul.addr %s178, 8
        %s180 = scalar_lea.vmem %s0, %s179
        %p181 = scmp.lt.s32.totalorder %s16, 1
        %s182 = scalar_select %p181, %s16, 1
        %s183 = smul.addr %s182, 4
        %s184 = smul.addr %s183, 8
        %s185 = scalar_lea.vmem %s3, %s184
        %v186 = vld [vmem:[%s180] sm:$0xff]
        %v187 = vld [vmem:[%s180 + $0x8] sm:$0xff]
        %v188 = vld [vmem:[%s180 + $0x10] sm:$0xff]
        %v189 = vld [vmem:[%s180 + $0x18] sm:$0xff]
        %s190 = scalar_lea.vmem %s180, 32
        %v191 = vld [vmem:[%s190] sm:$0xff]
        %v192 = vld [vmem:[%s190 + $0x8] sm:$0xff]
        %v193 = vld [vmem:[%s190 + $0x10] sm:$0xff]
        %v194 = vld [vmem:[%s190 + $0x18] sm:$0xff]
        %s195 = scalar_lea.vmem %s180, 64
        %v196 = vld [vmem:[%s195] sm:$0xff]
        %v197 = vld [vmem:[%s195 + $0x8] sm:$0xff]
        %v198 = vld [vmem:[%s195 + $0x10] sm:$0xff]
        %v199 = vld [vmem:[%s195 + $0x18] sm:$0xff]
        %s200 = sld [smem:[#allocation3]]
        %v201 = vstv %s200
        %v202 = vmul.f32 %v201, %v186
        %v203 = vmul.f32 %v201, %v187
        %v204 = vmul.f32 %v201, %v188
        %v205 = vmul.f32 %v201, %v189
        %s206 = sld [smem:[#allocation3 + $0x19]]
        %v207 = vstv %s206
        %v208 = vmul.f32 %v207, %v191
        %v209 = vmul.f32 %v207, %v192
        %v210 = vmul.f32 %v207, %v193
        %v211 = vmul.f32 %v207, %v194
        %v212 = vadd.f32 %v202, %v208
        %v213 = vadd.f32 %v203, %v209
        %v214 = vadd.f32 %v204, %v210
        %v215 = vadd.f32 %v205, %v211
        %s216 = sld [smem:[#allocation3 + $0x32]]
        %v217 = vstv %s216
        %v218 = vmul.f32 %v217, %v196
        %v219 = vmul.f32 %v217, %v197
        %v220 = vmul.f32 %v217, %v198
        %v221 = vmul.f32 %v217, %v199
        %v222 = vadd.f32 %v212, %v218
        %v223 = vadd.f32 %v213, %v219
        %v224 = vadd.f32 %v214, %v220
        %v225 = vadd.f32 %v215, %v221
        %v226 = vadd.f32 %v222, 0.0
        %v227 = vadd.f32 %v223, 0.0
        %v228 = vadd.f32 %v224, 0.0
        %v229 = vadd.f32 %v225, 0.0
        %s230 = sld [smem:[#allocation3 + $0x1]]
        %v231 = vstv %s230
        %v232 = vmul.f32 %v231, %v186
        %v233 = vmul.f32 %v231, %v187
        %v234 = vmul.f32 %v231, %v188
        %v235 = vmul.f32 %v231, %v189
        %s236 = sld [smem:[#allocation3 + $0x1a]]
        %v237 = vstv %s236
        %v238 = vmul.f32 %v237, %v191
        %v239 = vmul.f32 %v237, %v192
        %v240 = vmul.f32 %v237, %v193
        %v241 = vmul.f32 %v237, %v194
        %v242 = vadd.f32 %v232, %v238
        %v243 = vadd.f32 %v233, %v239
        %v244 = vadd.f32 %v234, %v240
        %v245 = vadd.f32 %v235, %v241
        %s246 = sld [smem:[#allocation3 + $0x33]]
        %v247 = vstv %s246
        %v248 = vmul.f32 %v247, %v196
        %v249 = vmul.f32 %v247, %v197
        %v250 = vmul.f32 %v247, %v198
        %v251 = vmul.f32 %v247, %v199
        %v252 = vadd.f32 %v242, %v248
        %v253 = vadd.f32 %v243, %v249
        %v254 = vadd.f32 %v244, %v250
        %v255 = vadd.f32 %v245, %v251
        %260 = vrot.lane.b32.xlu0 %v252, 127
        %v261 = vpop.permute.xlu0 %260
        %262 = vrot.lane.b32.xlu0 %v253, 127
        %v263 = vpop.permute.xlu0 %262
        %264 = vrot.lane.b32.xlu0 %v254, 127
        %v265 = vpop.permute.xlu0 %264
        %266 = vrot.lane.b32.xlu0 %v255, 127
        %v267 = vpop.permute.xlu0 %266
        %v272 = vadd.f32 %v226, %v261
        %v273 = vadd.f32 %v227, %v263
        %v274 = vadd.f32 %v228, %v265
        %v275 = vadd.f32 %v229, %v267
        %s276 = sld [smem:[#allocation3 + $0x2]]
        %v277 = vstv %s276
        %v278 = vmul.f32 %v277, %v186
        %v279 = vmul.f32 %v277, %v187
        %v280 = vmul.f32 %v277, %v188
        %v281 = vmul.f32 %v277, %v189
        %s282 = sld [smem:[#allocation3 + $0x1b]]
        %v283 = vstv %s282
        %v284 = vmul.f32 %v283, %v191
        %v285 = vmul.f32 %v283, %v192
        %v286 = vmul.f32 %v283, %v193
        %v287 = vmul.f32 %v283, %v194
        %v288 = vadd.f32 %v278, %v284
        %v289 = vadd.f32 %v279, %v285
        %v290 = vadd.f32 %v280, %v286
        %v291 = vadd.f32 %v281, %v287
        %s292 = sld [smem:[#allocation3 + $0x34]]
        %v293 = vstv %s292
        %v294 = vmul.f32 %v293, %v196
        %v295 = vmul.f32 %v293, %v197
        %v296 = vmul.f32 %v293, %v198
        %v297 = vmul.f32 %v293, %v199
        %v298 = vadd.f32 %v288, %v294
        %v299 = vadd.f32 %v289, %v295
        %v300 = vadd.f32 %v290, %v296
        %v301 = vadd.f32 %v291, %v297
        %306 = vrot.lane.b32.xlu0 %v298, 126
        %v307 = vpop.permute.xlu0 %306
        %308 = vrot.lane.b32.xlu0 %v299, 126
        %v309 = vpop.permute.xlu0 %308
        %310 = vrot.lane.b32.xlu0 %v300, 126
        %v311 = vpop.permute.xlu0 %310
        %312 = vrot.lane.b32.xlu0 %v301, 126
        %v313 = vpop.permute.xlu0 %312
        %v318 = vadd.f32 %v272, %v307
        %v319 = vadd.f32 %v273, %v309
        %v320 = vadd.f32 %v274, %v311
        %v321 = vadd.f32 %v275, %v313
        %s322 = sld [smem:[#allocation3 + $0x3]]
        %v323 = vstv %s322
        %v324 = vmul.f32 %v323, %v186
        %v325 = vmul.f32 %v323, %v187
        %v326 = vmul.f32 %v323, %v188
        %v327 = vmul.f32 %v323, %v189
        %s328 = sld [smem:[#allocation3 + $0x1c]]
        %v329 = vstv %s328
        %v330 = vmul.f32 %v329, %v191
        %v331 = vmul.f32 %v329, %v192
        %v332 = vmul.f32 %v329, %v193
        %v333 = vmul.f32 %v329, %v194
        %v334 = vadd.f32 %v324, %v330
        %v335 = vadd.f32 %v325, %v331
        %v336 = vadd.f32 %v326, %v332
        %v337 = vadd.f32 %v327, %v333
        %s338 = sld [smem:[#allocation3 + $0x35]]
        %v339 = vstv %s338
        %v340 = vmul.f32 %v339, %v196
        %v341 = vmul.f32 %v339, %v197
        %v342 = vmul.f32 %v339, %v198
        %v343 = vmul.f32 %v339, %v199
        %v344 = vadd.f32 %v334, %v340
        %v345 = vadd.f32 %v335, %v341
        %v346 = vadd.f32 %v336, %v342
        %v347 = vadd.f32 %v337, %v343
        %352 = vrot.lane.b32.xlu0 %v344, 125
        %v353 = vpop.permute.xlu0 %352
        %354 = vrot.lane.b32.xlu0 %v345, 125
        %v355 = vpop.permute.xlu0 %354
        %356 = vrot.lane.b32.xlu0 %v346, 125
        %v357 = vpop.permute.xlu0 %356
        %358 = vrot.lane.b32.xlu0 %v347, 125
        %v359 = vpop.permute.xlu0 %358
        %v364 = vadd.f32 %v318, %v353
        %v365 = vadd.f32 %v319, %v355
        %v366 = vadd.f32 %v320, %v357
        %v367 = vadd.f32 %v321, %v359
        %s368 = sld [smem:[#allocation3 + $0x4]]
        %v369 = vstv %s368
        %v370 = vmul.f32 %v369, %v186
        %v371 = vmul.f32 %v369, %v187
        %v372 = vmul.f32 %v369, %v188
        %v373 = vmul.f32 %v369, %v189
        %s374 = sld [smem:[#allocation3 + $0x1d]]
        %v375 = vstv %s374
        %v376 = vmul.f32 %v375, %v191
        %v377 = vmul.f32 %v375, %v192
        %v378 = vmul.f32 %v375, %v193
        %v379 = vmul.f32 %v375, %v194
        %v380 = vadd.f32 %v370, %v376
        %v381 = vadd.f32 %v371, %v377
        %v382 = vadd.f32 %v372, %v378
        %v383 = vadd.f32 %v373, %v379
        %s384 = sld [smem:[#allocation3 + $0x36]]
        %v385 = vstv %s384
        %v386 = vmul.f32 %v385, %v196
        %v387 = vmul.f32 %v385, %v197
        %v388 = vmul.f32 %v385, %v198
        %v389 = vmul.f32 %v385, %v199
        %v390 = vadd.f32 %v380, %v386
        %v391 = vadd.f32 %v381, %v387
        %v392 = vadd.f32 %v382, %v388
        %v393 = vadd.f32 %v383, %v389
        %398 = vrot.lane.b32.xlu0 %v390, 124
        %v399 = vpop.permute.xlu0 %398
        %400 = vrot.lane.b32.xlu0 %v391, 124
        %v401 = vpop.permute.xlu0 %400
        %402 = vrot.lane.b32.xlu0 %v392, 124
        %v403 = vpop.permute.xlu0 %402
        %404 = vrot.lane.b32.xlu0 %v393, 124
        %v405 = vpop.permute.xlu0 %404
        %v410 = vadd.f32 %v364, %v399
        %v411 = vadd.f32 %v365, %v401
        %v412 = vadd.f32 %v366, %v403
        %v413 = vadd.f32 %v367, %v405
        %s414 = sld [smem:[#allocation3 + $0x5]]
        %v415 = vstv %s414
        %v416 = vmul.f32 %v415, %v186
        %v417 = vmul.f32 %v415, %v187
        %v418 = vmul.f32 %v415, %v188
        %v419 = vmul.f32 %v415, %v189
        %s420 = sld [smem:[#allocation3 + $0x1e]]
        %v421 = vstv %s420
        %v422 = vmul.f32 %v421, %v191
        %v423 = vmul.f32 %v421, %v192
        %v424 = vmul.f32 %v421, %v193
        %v425 = vmul.f32 %v421, %v194
        %v426 = vadd.f32 %v416, %v422
        %v427 = vadd.f32 %v417, %v423
        %v428 = vadd.f32 %v418, %v424
        %v429 = vadd.f32 %v419, %v425
        %s430 = sld [smem:[#allocation3 + $0x37]]
        %v431 = vstv %s430
        %v432 = vmul.f32 %v431, %v196
        %v433 = vmul.f32 %v431, %v197
        %v434 = vmul.f32 %v431, %v198
        %v435 = vmul.f32 %v431, %v199
        %v436 = vadd.f32 %v426, %v432
        %v437 = vadd.f32 %v427, %v433
        %v438 = vadd.f32 %v428, %v434
        %v439 = vadd.f32 %v429, %v435
        %vm444 = vcmask 1046528
        %v445 = vrot.slane %v436, 1
        %v446 = vrot.slane %v437, 1
        %v447 = vsel %vm444, %v445, %v446
        %v448 = vrot.slane %v438, 1
        %v449 = vsel %vm444, %v446, %v448
        %v450 = vrot.slane %v439, 1
        %v451 = vsel %vm444, %v448, %v450
        %v456 = vadd.f32 %v410, %v447
        %v457 = vadd.f32 %v411, %v449
        %v458 = vadd.f32 %v412, %v451
        %v459 = vadd.f32 %v413, %v450
        %s460 = sld [smem:[#allocation3 + $0x6]]
        %v461 = vstv %s460
        %v462 = vmul.f32 %v461, %v186
        %v463 = vmul.f32 %v461, %v187
        %v464 = vmul.f32 %v461, %v188
        %v465 = vmul.f32 %v461, %v189
        %s466 = sld [smem:[#allocation3 + $0x1f]]
        %v467 = vstv %s466
        %v468 = vmul.f32 %v467, %v191
        %v469 = vmul.f32 %v467, %v192
        %v470 = vmul.f32 %v467, %v193
        %v471 = vmul.f32 %v467, %v194
        %v472 = vadd.f32 %v462, %v468
        %v473 = vadd.f32 %v463, %v469
        %v474 = vadd.f32 %v464, %v470
        %v475 = vadd.f32 %v465, %v471
        %s476 = sld [smem:[#allocation3 + $0x38]]
        %v477 = vstv %s476
        %v478 = vmul.f32 %v477, %v196
        %v479 = vmul.f32 %v477, %v197
        %v480 = vmul.f32 %v477, %v198
        %v481 = vmul.f32 %v477, %v199
        %v482 = vadd.f32 %v472, %v478
        %v483 = vadd.f32 %v473, %v479
        %v484 = vadd.f32 %v474, %v480
        %v485 = vadd.f32 %v475, %v481
        %v490 = vrot.slane %v482, 1
        %v491 = vrot.slane %v483, 1
        %v492 = vsel %vm444, %v490, %v491
        %v493 = vrot.slane %v484, 1
        %v494 = vsel %vm444, %v491, %v493
        %v495 = vrot.slane %v485, 1
        %v496 = vsel %vm444, %v493, %v495
        %497 = vrot.lane.b32.xlu0 %v492, 127
        %v498 = vpop.permute.xlu0 %497
        %499 = vrot.lane.b32.xlu0 %v494, 127
        %v500 = vpop.permute.xlu0 %499
        %501 = vrot.lane.b32.xlu0 %v496, 127
        %v502 = vpop.permute.xlu0 %501
        %503 = vrot.lane.b32.xlu0 %v495, 127
        %v504 = vpop.permute.xlu0 %503
        %v509 = vadd.f32 %v456, %v498
        %v510 = vadd.f32 %v457, %v500
        %v511 = vadd.f32 %v458, %v502
        %v512 = vadd.f32 %v459, %v504
        %s513 = sld [smem:[#allocation3 + $0x7]]
        %v514 = vstv %s513
        %v515 = vmul.f32 %v514, %v186
        %v516 = vmul.f32 %v514, %v187
        %v517 = vmul.f32 %v514, %v188
        %v518 = vmul.f32 %v514, %v189
        %s519 = sld [smem:[#allocation3 + $0x20]]
        %v520 = vstv %s519
        %v521 = vmul.f32 %v520, %v191
        %v522 = vmul.f32 %v520, %v192
        %v523 = vmul.f32 %v520, %v193
        %v524 = vmul.f32 %v520, %v194
        %v525 = vadd.f32 %v515, %v521
        %v526 = vadd.f32 %v516, %v522
        %v527 = vadd.f32 %v517, %v523
        %v528 = vadd.f32 %v518, %v524
        %s529 = sld [smem:[#allocation3 + $0x39]]
        %v530 = vstv %s529
        %v531 = vmul.f32 %v530, %v196
        %v532 = vmul.f32 %v530, %v197
        %v533 = vmul.f32 %v530, %v198
        %v534 = vmul.f32 %v530, %v199
        %v535 = vadd.f32 %v525, %v531
        %v536 = vadd.f32 %v526, %v532
        %v537 = vadd.f32 %v527, %v533
        %v538 = vadd.f32 %v528, %v534
        %v543 = vrot.slane %v535, 1
        %v544 = vrot.slane %v536, 1
        %v545 = vsel %vm444, %v543, %v544
        %v546 = vrot.slane %v537, 1
        %v547 = vsel %vm444, %v544, %v546
        %v548 = vrot.slane %v538, 1
        %v549 = vsel %vm444, %v546, %v548
        %550 = vrot.lane.b32.xlu0 %v545, 126
        %v551 = vpop.permute.xlu0 %550
        %552 = vrot.lane.b32.xlu0 %v547, 126
        %v553 = vpop.permute.xlu0 %552
        %554 = vrot.lane.b32.xlu0 %v549, 126
        %v555 = vpop.permute.xlu0 %554
        %556 = vrot.lane.b32.xlu0 %v548, 126
        %v557 = vpop.permute.xlu0 %556
        %v562 = vadd.f32 %v509, %v551
        %v563 = vadd.f32 %v510, %v553
        %v564 = vadd.f32 %v511, %v555
        %v565 = vadd.f32 %v512, %v557
        %s566 = sld [smem:[#allocation3 + $0x8]]
        %v567 = vstv %s566
        %v568 = vmul.f32 %v567, %v186
        %v569 = vmul.f32 %v567, %v187
        %v570 = vmul.f32 %v567, %v188
        %v571 = vmul.f32 %v567, %v189
        %s572 = sld [smem:[#allocation3 + $0x21]]
        %v573 = vstv %s572
        %v574 = vmul.f32 %v573, %v191
        %v575 = vmul.f32 %v573, %v192
        %v576 = vmul.f32 %v573, %v193
        %v577 = vmul.f32 %v573, %v194
        %v578 = vadd.f32 %v568, %v574
        %v579 = vadd.f32 %v569, %v575
        %v580 = vadd.f32 %v570, %v576
        %v581 = vadd.f32 %v571, %v577
        %s582 = sld [smem:[#allocation3 + $0x3a]]
        %v583 = vstv %s582
        %v584 = vmul.f32 %v583, %v196
        %v585 = vmul.f32 %v583, %v197
        %v586 = vmul.f32 %v583, %v198
        %v587 = vmul.f32 %v583, %v199
        %v588 = vadd.f32 %v578, %v584
        %v589 = vadd.f32 %v579, %v585
        %v590 = vadd.f32 %v580, %v586
        %v591 = vadd.f32 %v581, %v587
        %v596 = vrot.slane %v588, 1
        %v597 = vrot.slane %v589, 1
        %v598 = vsel %vm444, %v596, %v597
        %v599 = vrot.slane %v590, 1
        %v600 = vsel %vm444, %v597, %v599
        %v601 = vrot.slane %v591, 1
        %v602 = vsel %vm444, %v599, %v601
        %603 = vrot.lane.b32.xlu0 %v598, 125
        %v604 = vpop.permute.xlu0 %603
        %605 = vrot.lane.b32.xlu0 %v600, 125
        %v606 = vpop.permute.xlu0 %605
        %607 = vrot.lane.b32.xlu0 %v602, 125
        %v608 = vpop.permute.xlu0 %607
        %609 = vrot.lane.b32.xlu0 %v601, 125
        %v610 = vpop.permute.xlu0 %609
        %v615 = vadd.f32 %v562, %v604
        %v616 = vadd.f32 %v563, %v606
        %v617 = vadd.f32 %v564, %v608
        %v618 = vadd.f32 %v565, %v610
        %s619 = sld [smem:[#allocation3 + $0x9]]
        %v620 = vstv %s619
        %v621 = vmul.f32 %v620, %v186
        %v622 = vmul.f32 %v620, %v187
        %v623 = vmul.f32 %v620, %v188
        %v624 = vmul.f32 %v620, %v189
        %s625 = sld [smem:[#allocation3 + $0x22]]
        %v626 = vstv %s625
        %v627 = vmul.f32 %v626, %v191
        %v628 = vmul.f32 %v626, %v192
        %v629 = vmul.f32 %v626, %v193
        %v630 = vmul.f32 %v626, %v194
        %v631 = vadd.f32 %v621, %v627
        %v632 = vadd.f32 %v622, %v628
        %v633 = vadd.f32 %v623, %v629
        %v634 = vadd.f32 %v624, %v630
        %s635 = sld [smem:[#allocation3 + $0x3b]]
        %v636 = vstv %s635
        %v637 = vmul.f32 %v636, %v196
        %v638 = vmul.f32 %v636, %v197
        %v639 = vmul.f32 %v636, %v198
        %v640 = vmul.f32 %v636, %v199
        %v641 = vadd.f32 %v631, %v637
        %v642 = vadd.f32 %v632, %v638
        %v643 = vadd.f32 %v633, %v639
        %v644 = vadd.f32 %v634, %v640
        %v649 = vrot.slane %v641, 1
        %v650 = vrot.slane %v642, 1
        %v651 = vsel %vm444, %v649, %v650
        %v652 = vrot.slane %v643, 1
        %v653 = vsel %vm444, %v650, %v652
        %v654 = vrot.slane %v644, 1
        %v655 = vsel %vm444, %v652, %v654
        %656 = vrot.lane.b32.xlu0 %v651, 124
        %v657 = vpop.permute.xlu0 %656
        %658 = vrot.lane.b32.xlu0 %v653, 124
        %v659 = vpop.permute.xlu0 %658
        %660 = vrot.lane.b32.xlu0 %v655, 124
        %v661 = vpop.permute.xlu0 %660
        %662 = vrot.lane.b32.xlu0 %v654, 124
        %v663 = vpop.permute.xlu0 %662
        %v668 = vadd.f32 %v615, %v657
        %v669 = vadd.f32 %v616, %v659
        %v670 = vadd.f32 %v617, %v661
        %v671 = vadd.f32 %v618, %v663
        %s672 = sld [smem:[#allocation3 + $0xa]]
        %v673 = vstv %s672
        %v674 = vmul.f32 %v673, %v186
        %v675 = vmul.f32 %v673, %v187
        %v676 = vmul.f32 %v673, %v188
        %v677 = vmul.f32 %v673, %v189
        %s678 = sld [smem:[#allocation3 + $0x23]]
        %v679 = vstv %s678
        %v680 = vmul.f32 %v679, %v191
        %v681 = vmul.f32 %v679, %v192
        %v682 = vmul.f32 %v679, %v193
        %v683 = vmul.f32 %v679, %v194
        %v684 = vadd.f32 %v674, %v680
        %v685 = vadd.f32 %v675, %v681
        %v686 = vadd.f32 %v676, %v682
        %v687 = vadd.f32 %v677, %v683
        %s688 = sld [smem:[#allocation3 + $0x3c]]
        %v689 = vstv %s688
        %v690 = vmul.f32 %v689, %v196
        %v691 = vmul.f32 %v689, %v197
        %v692 = vmul.f32 %v689, %v198
        %v693 = vmul.f32 %v689, %v199
        %v694 = vadd.f32 %v684, %v690
        %v695 = vadd.f32 %v685, %v691
        %v696 = vadd.f32 %v686, %v692
        %v697 = vadd.f32 %v687, %v693
        %vm702 = vcmask 1045504
        %v703 = vrot.slane %v694, 2
        %v704 = vrot.slane %v695, 2
        %v705 = vsel %vm702, %v703, %v704
        %v706 = vrot.slane %v696, 2
        %v707 = vsel %vm702, %v704, %v706
        %v708 = vrot.slane %v697, 2
        %v709 = vsel %vm702, %v706, %v708
        %v714 = vadd.f32 %v668, %v705
        %v715 = vadd.f32 %v669, %v707
        %v716 = vadd.f32 %v670, %v709
        %v717 = vadd.f32 %v671, %v708
        %s718 = sld [smem:[#allocation3 + $0xb]]
        %v719 = vstv %s718
        %v720 = vmul.f32 %v719, %v186
        %v721 = vmul.f32 %v719, %v187
        %v722 = vmul.f32 %v719, %v188
        %v723 = vmul.f32 %v719, %v189
        %s724 = sld [smem:[#allocation3 + $0x24]]
        %v725 = vstv %s724
        %v726 = vmul.f32 %v725, %v191
        %v727 = vmul.f32 %v725, %v192
        %v728 = vmul.f32 %v725, %v193
        %v729 = vmul.f32 %v725, %v194
        %v730 = vadd.f32 %v720, %v726
        %v731 = vadd.f32 %v721, %v727
        %v732 = vadd.f32 %v722, %v728
        %v733 = vadd.f32 %v723, %v729
        %s734 = sld [smem:[#allocation3 + $0x3d]]
        %v735 = vstv %s734
        %v736 = vmul.f32 %v735, %v196
        %v737 = vmul.f32 %v735, %v197
        %v738 = vmul.f32 %v735, %v198
        %v739 = vmul.f32 %v735, %v199
        %v740 = vadd.f32 %v730, %v736
        %v741 = vadd.f32 %v731, %v737
        %v742 = vadd.f32 %v732, %v738
        %v743 = vadd.f32 %v733, %v739
        %v748 = vrot.slane %v740, 2
        %v749 = vrot.slane %v741, 2
        %v750 = vsel %vm702, %v748, %v749
        %v751 = vrot.slane %v742, 2
        %v752 = vsel %vm702, %v749, %v751
        %v753 = vrot.slane %v743, 2
        %v754 = vsel %vm702, %v751, %v753
        %755 = vrot.lane.b32.xlu0 %v750, 127
        %v756 = vpop.permute.xlu0 %755
        %757 = vrot.lane.b32.xlu0 %v752, 127
        %v758 = vpop.permute.xlu0 %757
        %759 = vrot.lane.b32.xlu0 %v754, 127
        %v760 = vpop.permute.xlu0 %759
        %761 = vrot.lane.b32.xlu0 %v753, 127
        %v762 = vpop.permute.xlu0 %761
        %v767 = vadd.f32 %v714, %v756
        %v768 = vadd.f32 %v715, %v758
        %v769 = vadd.f32 %v716, %v760
        %v770 = vadd.f32 %v717, %v762
        %s771 = sld [smem:[#allocation3 + $0xc]]
        %v772 = vstv %s771
        %v773 = vmul.f32 %v772, %v186
        %v774 = vmul.f32 %v772, %v187
        %v775 = vmul.f32 %v772, %v188
        %v776 = vmul.f32 %v772, %v189
        %s777 = sld [smem:[#allocation3 + $0x25]]
        %v778 = vstv %s777
        %v779 = vmul.f32 %v778, %v191
        %v780 = vmul.f32 %v778, %v192
        %v781 = vmul.f32 %v778, %v193
        %v782 = vmul.f32 %v778, %v194
        %v783 = vadd.f32 %v773, %v779
        %v784 = vadd.f32 %v774, %v780
        %v785 = vadd.f32 %v775, %v781
        %v786 = vadd.f32 %v776, %v782
        %s787 = sld [smem:[#allocation3 + $0x3e]]
        %v788 = vstv %s787
        %v789 = vmul.f32 %v788, %v196
        %v790 = vmul.f32 %v788, %v197
        %v791 = vmul.f32 %v788, %v198
        %v792 = vmul.f32 %v788, %v199
        %v793 = vadd.f32 %v783, %v789
        %v794 = vadd.f32 %v784, %v790
        %v795 = vadd.f32 %v785, %v791
        %v796 = vadd.f32 %v786, %v792
        %v801 = vrot.slane %v793, 2
        %v802 = vrot.slane %v794, 2
        %v803 = vsel %vm702, %v801, %v802
        %v804 = vrot.slane %v795, 2
        %v805 = vsel %vm702, %v802, %v804
        %v806 = vrot.slane %v796, 2
        %v807 = vsel %vm702, %v804, %v806
        %808 = vrot.lane.b32.xlu0 %v803, 126
        %v809 = vpop.permute.xlu0 %808
        %810 = vrot.lane.b32.xlu0 %v805, 126
        %v811 = vpop.permute.xlu0 %810
        %812 = vrot.lane.b32.xlu0 %v807, 126
        %v813 = vpop.permute.xlu0 %812
        %814 = vrot.lane.b32.xlu0 %v806, 126
        %v815 = vpop.permute.xlu0 %814
        %v820 = vadd.f32 %v767, %v809
        %v821 = vadd.f32 %v768, %v811
        %v822 = vadd.f32 %v769, %v813
        %v823 = vadd.f32 %v770, %v815
        %s824 = sld [smem:[#allocation3 + $0xd]]
        %v825 = vstv %s824
        %v826 = vmul.f32 %v825, %v186
        %v827 = vmul.f32 %v825, %v187
        %v828 = vmul.f32 %v825, %v188
        %v829 = vmul.f32 %v825, %v189
        %s830 = sld [smem:[#allocation3 + $0x26]]
        %v831 = vstv %s830
        %v832 = vmul.f32 %v831, %v191
        %v833 = vmul.f32 %v831, %v192
        %v834 = vmul.f32 %v831, %v193
        %v835 = vmul.f32 %v831, %v194
        %v836 = vadd.f32 %v826, %v832
        %v837 = vadd.f32 %v827, %v833
        %v838 = vadd.f32 %v828, %v834
        %v839 = vadd.f32 %v829, %v835
        %s840 = sld [smem:[#allocation3 + $0x3f]]
        %v841 = vstv %s840
        %v842 = vmul.f32 %v841, %v196
        %v843 = vmul.f32 %v841, %v197
        %v844 = vmul.f32 %v841, %v198
        %v845 = vmul.f32 %v841, %v199
        %v846 = vadd.f32 %v836, %v842
        %v847 = vadd.f32 %v837, %v843
        %v848 = vadd.f32 %v838, %v844
        %v849 = vadd.f32 %v839, %v845
        %v854 = vrot.slane %v846, 2
        %v855 = vrot.slane %v847, 2
        %v856 = vsel %vm702, %v854, %v855
        %v857 = vrot.slane %v848, 2
        %v858 = vsel %vm702, %v855, %v857
        %v859 = vrot.slane %v849, 2
        %v860 = vsel %vm702, %v857, %v859
        %861 = vrot.lane.b32.xlu0 %v856, 125
        %v862 = vpop.permute.xlu0 %861
        %863 = vrot.lane.b32.xlu0 %v858, 125
        %v864 = vpop.permute.xlu0 %863
        %865 = vrot.lane.b32.xlu0 %v860, 125
        %v866 = vpop.permute.xlu0 %865
        %867 = vrot.lane.b32.xlu0 %v859, 125
        %v868 = vpop.permute.xlu0 %867
        %v873 = vadd.f32 %v820, %v862
        %v874 = vadd.f32 %v821, %v864
        %v875 = vadd.f32 %v822, %v866
        %v876 = vadd.f32 %v823, %v868
        %s877 = sld [smem:[#allocation3 + $0xe]]
        %v878 = vstv %s877
        %v879 = vmul.f32 %v878, %v186
        %v880 = vmul.f32 %v878, %v187
        %v881 = vmul.f32 %v878, %v188
        %v882 = vmul.f32 %v878, %v189
        %s883 = sld [smem:[#allocation3 + $0x27]]
        %v884 = vstv %s883
        %v885 = vmul.f32 %v884, %v191
        %v886 = vmul.f32 %v884, %v192
        %v887 = vmul.f32 %v884, %v193
        %v888 = vmul.f32 %v884, %v194
        %v889 = vadd.f32 %v879, %v885
        %v890 = vadd.f32 %v880, %v886
        %v891 = vadd.f32 %v881, %v887
        %v892 = vadd.f32 %v882, %v888
        %s893 = sld [smem:[#allocation3 + $0x40]]
        %v894 = vstv %s893
        %v895 = vmul.f32 %v894, %v196
        %v896 = vmul.f32 %v894, %v197
        %v897 = vmul.f32 %v894, %v198
        %v898 = vmul.f32 %v894, %v199
        %v899 = vadd.f32 %v889, %v895
        %v900 = vadd.f32 %v890, %v896
        %v901 = vadd.f32 %v891, %v897
        %v902 = vadd.f32 %v892, %v898
        %v907 = vrot.slane %v899, 2
        %v908 = vrot.slane %v900, 2
        %v909 = vsel %vm702, %v907, %v908
        %v910 = vrot.slane %v901, 2
        %v911 = vsel %vm702, %v908, %v910
        %v912 = vrot.slane %v902, 2
        %v913 = vsel %vm702, %v910, %v912
        %914 = vrot.lane.b32.xlu0 %v909, 124
        %v915 = vpop.permute.xlu0 %914
        %916 = vrot.lane.b32.xlu0 %v911, 124
        %v917 = vpop.permute.xlu0 %916
        %918 = vrot.lane.b32.xlu0 %v913, 124
        %v919 = vpop.permute.xlu0 %918
        %920 = vrot.lane.b32.xlu0 %v912, 124
        %v921 = vpop.permute.xlu0 %920
        %v926 = vadd.f32 %v873, %v915
        %v927 = vadd.f32 %v874, %v917
        %v928 = vadd.f32 %v875, %v919
        %v929 = vadd.f32 %v876, %v921
        %s930 = sld [smem:[#allocation3 + $0xf]]
        %v931 = vstv %s930
        %v932 = vmul.f32 %v931, %v186
        %v933 = vmul.f32 %v931, %v187
        %v934 = vmul.f32 %v931, %v188
        %v935 = vmul.f32 %v931, %v189
        %s936 = sld [smem:[#allocation3 + $0x28]]
        %v937 = vstv %s936
        %v938 = vmul.f32 %v937, %v191
        %v939 = vmul.f32 %v937, %v192
        %v940 = vmul.f32 %v937, %v193
        %v941 = vmul.f32 %v937, %v194
        %v942 = vadd.f32 %v932, %v938
        %v943 = vadd.f32 %v933, %v939
        %v944 = vadd.f32 %v934, %v940
        %v945 = vadd.f32 %v935, %v941
        %s946 = sld [smem:[#allocation3 + $0x41]]
        %v947 = vstv %s946
        %v948 = vmul.f32 %v947, %v196
        %v949 = vmul.f32 %v947, %v197
        %v950 = vmul.f32 %v947, %v198
        %v951 = vmul.f32 %v947, %v199
        %v952 = vadd.f32 %v942, %v948
        %v953 = vadd.f32 %v943, %v949
        %v954 = vadd.f32 %v944, %v950
        %v955 = vadd.f32 %v945, %v951
        %vm960 = vcmask 1044480
        %v961 = vrot.slane %v952, 3
        %v962 = vrot.slane %v953, 3
        %v963 = vsel %vm960, %v961, %v962
        %v964 = vrot.slane %v954, 3
        %v965 = vsel %vm960, %v962, %v964
        %v966 = vrot.slane %v955, 3
        %v967 = vsel %vm960, %v964, %v966
        %v972 = vadd.f32 %v926, %v963
        %v973 = vadd.f32 %v927, %v965
        %v974 = vadd.f32 %v928, %v967
        %v975 = vadd.f32 %v929, %v966
        %s976 = sld [smem:[#allocation3 + $0x10]]
        %v977 = vstv %s976
        %v978 = vmul.f32 %v977, %v186
        %v979 = vmul.f32 %v977, %v187
        %v980 = vmul.f32 %v977, %v188
        %v981 = vmul.f32 %v977, %v189
        %s982 = sld [smem:[#allocation3 + $0x29]]
        %v983 = vstv %s982
        %v984 = vmul.f32 %v983, %v191
        %v985 = vmul.f32 %v983, %v192
        %v986 = vmul.f32 %v983, %v193
        %v987 = vmul.f32 %v983, %v194
        %v988 = vadd.f32 %v978, %v984
        %v989 = vadd.f32 %v979, %v985
        %v990 = vadd.f32 %v980, %v986
        %v991 = vadd.f32 %v981, %v987
        %s992 = sld [smem:[#allocation3 + $0x42]]
        %v993 = vstv %s992
        %v994 = vmul.f32 %v993, %v196
        %v995 = vmul.f32 %v993, %v197
        %v996 = vmul.f32 %v993, %v198
        %v997 = vmul.f32 %v993, %v199
        %v998 = vadd.f32 %v988, %v994
        %v999 = vadd.f32 %v989, %v995
        %v1000 = vadd.f32 %v990, %v996
        %v1001 = vadd.f32 %v991, %v997
        %v1006 = vrot.slane %v998, 3
        %v1007 = vrot.slane %v999, 3
        %v1008 = vsel %vm960, %v1006, %v1007
        %v1009 = vrot.slane %v1000, 3
        %v1010 = vsel %vm960, %v1007, %v1009
        %v1011 = vrot.slane %v1001, 3
        %v1012 = vsel %vm960, %v1009, %v1011
        %1013 = vrot.lane.b32.xlu0 %v1008, 127
        %v1014 = vpop.permute.xlu0 %1013
        %1015 = vrot.lane.b32.xlu0 %v1010, 127
        %v1016 = vpop.permute.xlu0 %1015
        %1017 = vrot.lane.b32.xlu0 %v1012, 127
        %v1018 = vpop.permute.xlu0 %1017
        %1019 = vrot.lane.b32.xlu0 %v1011, 127
        %v1020 = vpop.permute.xlu0 %1019
        %v1025 = vadd.f32 %v972, %v1014
        %v1026 = vadd.f32 %v973, %v1016
        %v1027 = vadd.f32 %v974, %v1018
        %v1028 = vadd.f32 %v975, %v1020
        %s1029 = sld [smem:[#allocation3 + $0x11]]
        %v1030 = vstv %s1029
        %v1031 = vmul.f32 %v1030, %v186
        %v1032 = vmul.f32 %v1030, %v187
        %v1033 = vmul.f32 %v1030, %v188
        %v1034 = vmul.f32 %v1030, %v189
        %s1035 = sld [smem:[#allocation3 + $0x2a]]
        %v1036 = vstv %s1035
        %v1037 = vmul.f32 %v1036, %v191
        %v1038 = vmul.f32 %v1036, %v192
        %v1039 = vmul.f32 %v1036, %v193
        %v1040 = vmul.f32 %v1036, %v194
        %v1041 = vadd.f32 %v1031, %v1037
        %v1042 = vadd.f32 %v1032, %v1038
        %v1043 = vadd.f32 %v1033, %v1039
        %v1044 = vadd.f32 %v1034, %v1040
        %s1045 = sld [smem:[#allocation3 + $0x43]]
        %v1046 = vstv %s1045
        %v1047 = vmul.f32 %v1046, %v196
        %v1048 = vmul.f32 %v1046, %v197
        %v1049 = vmul.f32 %v1046, %v198
        %v1050 = vmul.f32 %v1046, %v199
        %v1051 = vadd.f32 %v1041, %v1047
        %v1052 = vadd.f32 %v1042, %v1048
        %v1053 = vadd.f32 %v1043, %v1049
        %v1054 = vadd.f32 %v1044, %v1050
        %v1059 = vrot.slane %v1051, 3
        %v1060 = vrot.slane %v1052, 3
        %v1061 = vsel %vm960, %v1059, %v1060
        %v1062 = vrot.slane %v1053, 3
        %v1063 = vsel %vm960, %v1060, %v1062
        %v1064 = vrot.slane %v1054, 3
        %v1065 = vsel %vm960, %v1062, %v1064
        %1066 = vrot.lane.b32.xlu0 %v1061, 126
        %v1067 = vpop.permute.xlu0 %1066
        %1068 = vrot.lane.b32.xlu0 %v1063, 126
        %v1069 = vpop.permute.xlu0 %1068
        %1070 = vrot.lane.b32.xlu0 %v1065, 126
        %v1071 = vpop.permute.xlu0 %1070
        %1072 = vrot.lane.b32.xlu0 %v1064, 126
        %v1073 = vpop.permute.xlu0 %1072
        %v1078 = vadd.f32 %v1025, %v1067
        %v1079 = vadd.f32 %v1026, %v1069
        %v1080 = vadd.f32 %v1027, %v1071
        %v1081 = vadd.f32 %v1028, %v1073
        %s1082 = sld [smem:[#allocation3 + $0x12]]
        %v1083 = vstv %s1082
        %v1084 = vmul.f32 %v1083, %v186
        %v1085 = vmul.f32 %v1083, %v187
        %v1086 = vmul.f32 %v1083, %v188
        %v1087 = vmul.f32 %v1083, %v189
        %s1088 = sld [smem:[#allocation3 + $0x2b]]
        %v1089 = vstv %s1088
        %v1090 = vmul.f32 %v1089, %v191
        %v1091 = vmul.f32 %v1089, %v192
        %v1092 = vmul.f32 %v1089, %v193
        %v1093 = vmul.f32 %v1089, %v194
        %v1094 = vadd.f32 %v1084, %v1090
        %v1095 = vadd.f32 %v1085, %v1091
        %v1096 = vadd.f32 %v1086, %v1092
        %v1097 = vadd.f32 %v1087, %v1093
        %s1098 = sld [smem:[#allocation3 + $0x44]]
        %v1099 = vstv %s1098
        %v1100 = vmul.f32 %v1099, %v196
        %v1101 = vmul.f32 %v1099, %v197
        %v1102 = vmul.f32 %v1099, %v198
        %v1103 = vmul.f32 %v1099, %v199
        %v1104 = vadd.f32 %v1094, %v1100
        %v1105 = vadd.f32 %v1095, %v1101
        %v1106 = vadd.f32 %v1096, %v1102
        %v1107 = vadd.f32 %v1097, %v1103
        %v1112 = vrot.slane %v1104, 3
        %v1113 = vrot.slane %v1105, 3
        %v1114 = vsel %vm960, %v1112, %v1113
        %v1115 = vrot.slane %v1106, 3
        %v1116 = vsel %vm960, %v1113, %v1115
        %v1117 = vrot.slane %v1107, 3
        %v1118 = vsel %vm960, %v1115, %v1117
        %1119 = vrot.lane.b32.xlu0 %v1114, 125
        %v1120 = vpop.permute.xlu0 %1119
        %1121 = vrot.lane.b32.xlu0 %v1116, 125
        %v1122 = vpop.permute.xlu0 %1121
        %1123 = vrot.lane.b32.xlu0 %v1118, 125
        %v1124 = vpop.permute.xlu0 %1123
        %1125 = vrot.lane.b32.xlu0 %v1117, 125
        %v1126 = vpop.permute.xlu0 %1125
        %v1131 = vadd.f32 %v1078, %v1120
        %v1132 = vadd.f32 %v1079, %v1122
        %v1133 = vadd.f32 %v1080, %v1124
        %v1134 = vadd.f32 %v1081, %v1126
        %s1135 = sld [smem:[#allocation3 + $0x13]]
        %v1136 = vstv %s1135
        %v1137 = vmul.f32 %v1136, %v186
        %v1138 = vmul.f32 %v1136, %v187
        %v1139 = vmul.f32 %v1136, %v188
        %v1140 = vmul.f32 %v1136, %v189
        %s1141 = sld [smem:[#allocation3 + $0x2c]]
        %v1142 = vstv %s1141
        %v1143 = vmul.f32 %v1142, %v191
        %v1144 = vmul.f32 %v1142, %v192
        %v1145 = vmul.f32 %v1142, %v193
        %v1146 = vmul.f32 %v1142, %v194
        %v1147 = vadd.f32 %v1137, %v1143
        %v1148 = vadd.f32 %v1138, %v1144
        %v1149 = vadd.f32 %v1139, %v1145
        %v1150 = vadd.f32 %v1140, %v1146
        %s1151 = sld [smem:[#allocation3 + $0x45]]
        %v1152 = vstv %s1151
        %v1153 = vmul.f32 %v1152, %v196
        %v1154 = vmul.f32 %v1152, %v197
        %v1155 = vmul.f32 %v1152, %v198
        %v1156 = vmul.f32 %v1152, %v199
        %v1157 = vadd.f32 %v1147, %v1153
        %v1158 = vadd.f32 %v1148, %v1154
        %v1159 = vadd.f32 %v1149, %v1155
        %v1160 = vadd.f32 %v1150, %v1156
        %v1165 = vrot.slane %v1157, 3
        %v1166 = vrot.slane %v1158, 3
        %v1167 = vsel %vm960, %v1165, %v1166
        %v1168 = vrot.slane %v1159, 3
        %v1169 = vsel %vm960, %v1166, %v1168
        %v1170 = vrot.slane %v1160, 3
        %v1171 = vsel %vm960, %v1168, %v1170
        %1172 = vrot.lane.b32.xlu0 %v1167, 124
        %v1173 = vpop.permute.xlu0 %1172
        %1174 = vrot.lane.b32.xlu0 %v1169, 124
        %v1175 = vpop.permute.xlu0 %1174
        %1176 = vrot.lane.b32.xlu0 %v1171, 124
        %v1177 = vpop.permute.xlu0 %1176
        %1178 = vrot.lane.b32.xlu0 %v1170, 124
        %v1179 = vpop.permute.xlu0 %1178
        %v1184 = vadd.f32 %v1131, %v1173
        %v1185 = vadd.f32 %v1132, %v1175
        %v1186 = vadd.f32 %v1133, %v1177
        %v1187 = vadd.f32 %v1134, %v1179
        %s1188 = sld [smem:[#allocation3 + $0x14]]
        %v1189 = vstv %s1188
        %v1190 = vmul.f32 %v1189, %v186
        %v1191 = vmul.f32 %v1189, %v187
        %v1192 = vmul.f32 %v1189, %v188
        %v1193 = vmul.f32 %v1189, %v189
        %s1194 = sld [smem:[#allocation3 + $0x2d]]
        %v1195 = vstv %s1194
        %v1196 = vmul.f32 %v1195, %v191
        %v1197 = vmul.f32 %v1195, %v192
        %v1198 = vmul.f32 %v1195, %v193
        %v1199 = vmul.f32 %v1195, %v194
        %v1200 = vadd.f32 %v1190, %v1196
        %v1201 = vadd.f32 %v1191, %v1197
        %v1202 = vadd.f32 %v1192, %v1198
        %v1203 = vadd.f32 %v1193, %v1199
        %s1204 = sld [smem:[#allocation3 + $0x46]]
        %v1205 = vstv %s1204
        %v1206 = vmul.f32 %v1205, %v196
        %v1207 = vmul.f32 %v1205, %v197
        %v1208 = vmul.f32 %v1205, %v198
        %v1209 = vmul.f32 %v1205, %v199
        %v1210 = vadd.f32 %v1200, %v1206
        %v1211 = vadd.f32 %v1201, %v1207
        %v1212 = vadd.f32 %v1202, %v1208
        %v1213 = vadd.f32 %v1203, %v1209
        %vm1218 = vcmask 1043456
        %v1219 = vrot.slane %v1210, 4
        %v1220 = vrot.slane %v1211, 4
        %v1221 = vsel %vm1218, %v1219, %v1220
        %v1222 = vrot.slane %v1212, 4
        %v1223 = vsel %vm1218, %v1220, %v1222
        %v1224 = vrot.slane %v1213, 4
        %v1225 = vsel %vm1218, %v1222, %v1224
        %v1230 = vadd.f32 %v1184, %v1221
        %v1231 = vadd.f32 %v1185, %v1223
        %v1232 = vadd.f32 %v1186, %v1225
        %v1233 = vadd.f32 %v1187, %v1224
        %s1234 = sld [smem:[#allocation3 + $0x15]]
        %v1235 = vstv %s1234
        %v1236 = vmul.f32 %v1235, %v186
        %v1237 = vmul.f32 %v1235, %v187
        %v1238 = vmul.f32 %v1235, %v188
        %v1239 = vmul.f32 %v1235, %v189
        %s1240 = sld [smem:[#allocation3 + $0x2e]]
        %v1241 = vstv %s1240
        %v1242 = vmul.f32 %v1241, %v191
        %v1243 = vmul.f32 %v1241, %v192
        %v1244 = vmul.f32 %v1241, %v193
        %v1245 = vmul.f32 %v1241, %v194
        %v1246 = vadd.f32 %v1236, %v1242
        %v1247 = vadd.f32 %v1237, %v1243
        %v1248 = vadd.f32 %v1238, %v1244
        %v1249 = vadd.f32 %v1239, %v1245
        %s1250 = sld [smem:[#allocation3 + $0x47]]
        %v1251 = vstv %s1250
        %v1252 = vmul.f32 %v1251, %v196
        %v1253 = vmul.f32 %v1251, %v197
        %v1254 = vmul.f32 %v1251, %v198
        %v1255 = vmul.f32 %v1251, %v199
        %v1256 = vadd.f32 %v1246, %v1252
        %v1257 = vadd.f32 %v1247, %v1253
        %v1258 = vadd.f32 %v1248, %v1254
        %v1259 = vadd.f32 %v1249, %v1255
        %v1264 = vrot.slane %v1256, 4
        %v1265 = vrot.slane %v1257, 4
        %v1266 = vsel %vm1218, %v1264, %v1265
        %v1267 = vrot.slane %v1258, 4
        %v1268 = vsel %vm1218, %v1265, %v1267
        %v1269 = vrot.slane %v1259, 4
        %v1270 = vsel %vm1218, %v1267, %v1269
        %1271 = vrot.lane.b32.xlu0 %v1266, 127
        %v1272 = vpop.permute.xlu0 %1271
        %1273 = vrot.lane.b32.xlu0 %v1268, 127
        %v1274 = vpop.permute.xlu0 %1273
        %1275 = vrot.lane.b32.xlu0 %v1270, 127
        %v1276 = vpop.permute.xlu0 %1275
        %1277 = vrot.lane.b32.xlu0 %v1269, 127
        %v1278 = vpop.permute.xlu0 %1277
        %v1283 = vadd.f32 %v1230, %v1272
        %v1284 = vadd.f32 %v1231, %v1274
        %v1285 = vadd.f32 %v1232, %v1276
        %v1286 = vadd.f32 %v1233, %v1278
        %s1287 = sld [smem:[#allocation3 + $0x16]]
        %v1288 = vstv %s1287
        %v1289 = vmul.f32 %v1288, %v186
        %v1290 = vmul.f32 %v1288, %v187
        %v1291 = vmul.f32 %v1288, %v188
        %v1292 = vmul.f32 %v1288, %v189
        %s1293 = sld [smem:[#allocation3 + $0x2f]]
        %v1294 = vstv %s1293
        %v1295 = vmul.f32 %v1294, %v191
        %v1296 = vmul.f32 %v1294, %v192
        %v1297 = vmul.f32 %v1294, %v193
        %v1298 = vmul.f32 %v1294, %v194
        %v1299 = vadd.f32 %v1289, %v1295
        %v1300 = vadd.f32 %v1290, %v1296
        %v1301 = vadd.f32 %v1291, %v1297
        %v1302 = vadd.f32 %v1292, %v1298
        %s1303 = sld [smem:[#allocation3 + $0x48]]
        %v1304 = vstv %s1303
        %v1305 = vmul.f32 %v1304, %v196
        %v1306 = vmul.f32 %v1304, %v197
        %v1307 = vmul.f32 %v1304, %v198
        %v1308 = vmul.f32 %v1304, %v199
        %v1309 = vadd.f32 %v1299, %v1305
        %v1310 = vadd.f32 %v1300, %v1306
        %v1311 = vadd.f32 %v1301, %v1307
        %v1312 = vadd.f32 %v1302, %v1308
        %v1317 = vrot.slane %v1309, 4
        %v1318 = vrot.slane %v1310, 4
        %v1319 = vsel %vm1218, %v1317, %v1318
        %v1320 = vrot.slane %v1311, 4
        %v1321 = vsel %vm1218, %v1318, %v1320
        %v1322 = vrot.slane %v1312, 4
        %v1323 = vsel %vm1218, %v1320, %v1322
        %1324 = vrot.lane.b32.xlu0 %v1319, 126
        %v1325 = vpop.permute.xlu0 %1324
        %1326 = vrot.lane.b32.xlu0 %v1321, 126
        %v1327 = vpop.permute.xlu0 %1326
        %1328 = vrot.lane.b32.xlu0 %v1323, 126
        %v1329 = vpop.permute.xlu0 %1328
        %1330 = vrot.lane.b32.xlu0 %v1322, 126
        %v1331 = vpop.permute.xlu0 %1330
        %v1336 = vadd.f32 %v1283, %v1325
        %v1337 = vadd.f32 %v1284, %v1327
        %v1338 = vadd.f32 %v1285, %v1329
        %v1339 = vadd.f32 %v1286, %v1331
        %s1340 = sld [smem:[#allocation3 + $0x17]]
        %v1341 = vstv %s1340
        %v1342 = vmul.f32 %v1341, %v186
        %v1343 = vmul.f32 %v1341, %v187
        %v1344 = vmul.f32 %v1341, %v188
        %v1345 = vmul.f32 %v1341, %v189
        %s1346 = sld [smem:[#allocation3 + $0x30]]
        %v1347 = vstv %s1346
        %v1348 = vmul.f32 %v1347, %v191
        %v1349 = vmul.f32 %v1347, %v192
        %v1350 = vmul.f32 %v1347, %v193
        %v1351 = vmul.f32 %v1347, %v194
        %v1352 = vadd.f32 %v1342, %v1348
        %v1353 = vadd.f32 %v1343, %v1349
        %v1354 = vadd.f32 %v1344, %v1350
        %v1355 = vadd.f32 %v1345, %v1351
        %s1356 = sld [smem:[#allocation3 + $0x49]]
        %v1357 = vstv %s1356
        %v1358 = vmul.f32 %v1357, %v196
        %v1359 = vmul.f32 %v1357, %v197
        %v1360 = vmul.f32 %v1357, %v198
        %v1361 = vmul.f32 %v1357, %v199
        %v1362 = vadd.f32 %v1352, %v1358
        %v1363 = vadd.f32 %v1353, %v1359
        %v1364 = vadd.f32 %v1354, %v1360
        %v1365 = vadd.f32 %v1355, %v1361
        %v1370 = vrot.slane %v1362, 4
        %v1371 = vrot.slane %v1363, 4
        %v1372 = vsel %vm1218, %v1370, %v1371
        %v1373 = vrot.slane %v1364, 4
        %v1374 = vsel %vm1218, %v1371, %v1373
        %v1375 = vrot.slane %v1365, 4
        %v1376 = vsel %vm1218, %v1373, %v1375
        %1377 = vrot.lane.b32.xlu0 %v1372, 125
        %v1378 = vpop.permute.xlu0 %1377
        %1379 = vrot.lane.b32.xlu0 %v1374, 125
        %v1380 = vpop.permute.xlu0 %1379
        %1381 = vrot.lane.b32.xlu0 %v1376, 125
        %v1382 = vpop.permute.xlu0 %1381
        %1383 = vrot.lane.b32.xlu0 %v1375, 125
        %v1384 = vpop.permute.xlu0 %1383
        %v1389 = vadd.f32 %v1336, %v1378
        %v1390 = vadd.f32 %v1337, %v1380
        %v1391 = vadd.f32 %v1338, %v1382
        %v1392 = vadd.f32 %v1339, %v1384
        %s1393 = sld [smem:[#allocation3 + $0x18]]
        %v1394 = vstv %s1393
        %v1395 = vmul.f32 %v1394, %v186
        %v1396 = vmul.f32 %v1394, %v187
        %v1397 = vmul.f32 %v1394, %v188
        %v1398 = vmul.f32 %v1394, %v189
        %s1399 = sld [smem:[#allocation3 + $0x31]]
        %v1400 = vstv %s1399
        %v1401 = vmul.f32 %v1400, %v191
        %v1402 = vmul.f32 %v1400, %v192
        %v1403 = vmul.f32 %v1400, %v193
        %v1404 = vmul.f32 %v1400, %v194
        %v1405 = vadd.f32 %v1395, %v1401
        %v1406 = vadd.f32 %v1396, %v1402
        %v1407 = vadd.f32 %v1397, %v1403
        %v1408 = vadd.f32 %v1398, %v1404
        %s1409 = sld [smem:[#allocation3 + $0x4a]]
        %v1410 = vstv %s1409
        %v1411 = vmul.f32 %v1410, %v196
        %v1412 = vmul.f32 %v1410, %v197
        %v1413 = vmul.f32 %v1410, %v198
        %v1414 = vmul.f32 %v1410, %v199
        %v1415 = vadd.f32 %v1405, %v1411
        %v1416 = vadd.f32 %v1406, %v1412
        %v1417 = vadd.f32 %v1407, %v1413
        %v1418 = vadd.f32 %v1408, %v1414
        %v1423 = vrot.slane %v1415, 4
        %v1424 = vrot.slane %v1416, 4
        %v1425 = vsel %vm1218, %v1423, %v1424
        %v1426 = vrot.slane %v1417, 4
        %v1427 = vsel %vm1218, %v1424, %v1426
        %v1428 = vrot.slane %v1418, 4
        %v1429 = vsel %vm1218, %v1426, %v1428
        %1430 = vrot.lane.b32.xlu0 %v1425, 124
        %v1431 = vpop.permute.xlu0 %1430
        %1432 = vrot.lane.b32.xlu0 %v1427, 124
        %v1433 = vpop.permute.xlu0 %1432
        %1434 = vrot.lane.b32.xlu0 %v1429, 124
        %v1435 = vpop.permute.xlu0 %1434
        %1436 = vrot.lane.b32.xlu0 %v1428, 124
        %v1437 = vpop.permute.xlu0 %1436
        %v1442 = vadd.f32 %v1389, %v1431
        %v1443 = vadd.f32 %v1390, %v1433
        %v1444 = vadd.f32 %v1391, %v1435
        %v1445 = vadd.f32 %v1392, %v1437
        %s1446 = sld [smem:[#allocation2]]
        %v1447 = vstv %s1446
        %v1448 = vadd.f32 %v1442, %v1447
        %v1449 = vadd.f32 %v1443, %v1447
        %v1450 = vadd.f32 %v1444, %v1447
        %v1451 = vadd.f32 %v1445, %v1447
        %vm1452 = vcmask 228352
        %1453 = vst.msk [vmem:[%s185] sm:$0xff] %vm1452, %v1448
        %1454 = vst.msk [vmem:[%s185 + $0x8] sm:$0xff] %vm1452, %v1449
        %1455 = vst.msk [vmem:[%s185 + $0x10] sm:$0xff] %vm1452, %v1450
        %vm1456 = vcmask 224256
        %1457 = vst.msk [vmem:[%s185 + $0x18] sm:$0xf] %vm1456, %v1451
        %p1458 = scmp.lt.s32.totalorder %s16, 1
        %s1459 = scalar_select %p1458, %s16, 1
        %s1460 = smul.addr %s1459, 4
        %s1461 = smul.addr %s1460, 8
        %s1462 = scalar_lea.vmem %s3, %s1461
        // Predicated region
        $region37: #{identification_forward.2} parent=31 // pred_check
          %p1463 = pneg %p102
        $region38: #{identification_forward.2} parent=31 // pred_check_branch
          %1465 = sbr.rel (%p1463) target = $region40
        $region39: #{identification_forward.2} parent=31 // pred_region
          _
        $region40: #{identification_forward.2} parent=31 // pred_fallthru
          _
      $region32: #{identification_forward.2} parent=5 // pred_fallthru
        _
      %p1466 = scmp.le.s32.totalorder 2, %s11
      // Predicated region
      $region41: #{identification_forward.2} parent=5 // pred_check
        %p1467 = pneg %p1466
      $region42: #{identification_forward.2} parent=5 // pred_check_branch
        %1469 = sbr.rel (%p1467) target = $region44
      $region43: #{identification_forward.2} parent=5 // pred_region
        %s1470 = ssub.s32 %s11, 2
        // Predicated region
        $region45: #{identification_forward.2} parent=43 // pred_check
          %p1471 = pneg %p108
        $region46: #{identification_forward.2} parent=43 // pred_check_branch
          %1473 = sbr.rel (%p1471) target = $region48
        $region47: #{identification_forward.2} parent=43 // pred_region
          %p1474 = scmp.lt.s32.totalorder %s17, 1
          %s1475 = scalar_select %p1474, %s17, 1
          %s1476 = smul.addr %s1475, 4
          %s1477 = smul.addr %s1476, 8
          %s1478 = scalar_lea.vmem %s3, %s1477
        $region48: #{identification_forward.2} parent=43 // pred_fallthru
          _
      $region44: #{identification_forward.2} parent=5 // pred_fallthru
        _
    $region6: #{identification_forward.2} parent=1 // loop_footer
      %s15 = sadd.s32 1, %s11
    $region7: #{identification_forward.2} parent=1 // loop_footer_branch
      %10 = sbr.rel target = $region3
    $region8: #{identification_forward.2} parent=1 // loop_exit
      _
    %1479 = vsyncpa [#allocation4], 1
    %s1480 = scalar_lea.sflag [#allocation4], 1
    %1481 = vsyncpa %s1480, 1

// kernel: identification_forward.3
$region0: #{identification_forward.3}
  #allocation0 [shape = 'u32[]', space=smem, size = 0x4, offset = 0x4, fixed_abs, tag = 'smem constant byte address 0x4 - core index']
  #allocation1 [shape = 'u32[144,128]{1,0:T(1,128)}', space=vmem, size = 0x12000, scoped, tag = 'internal scratch']
  #allocation2 [shape = 'f32[2,200]{1,0:T(2,128)}', space=vmem, size = 0x800, scoped, tag = 'scratch operand']
  %s0 = inlined_call_operand.vmem [shape: bf16[2,896], index: 0, kind: input, shape index: {}]
  %s1 = inlined_call_operand.vmem [shape: bf16[896,200], index: 1, kind: input, shape index: {}]
  %s2 = inlined_call_operand.vmem [shape: f32[1,200], index: 2, kind: input, shape index: {}]
  %s3 = inlined_call_operand.vmem [shape: f32[1,200], index: 3, kind: input, shape index: {}]
  %s4 = inlined_call_operand.vmem [shape: f32[1,200], index: 4, kind: input, shape index: {}]
  %s5 = inlined_call_operand.vmem [shape: f32[200,2], index: 5, kind: input, shape index: {}]
  %s6 = inlined_call_operand.hbm [shape: f32[2,2], index: 6, kind: output, shape index: {}]
  %s7 = sld [smem:[#allocation0]]
  $region42: #{identification_forward.3} parent=0
    _
  %s9 = ssub.s32 1, %s7
  %s10 = scalar_select 0, %s9, %s7
  $region1: #{identification_forward.3} parent=0
    #allocation3 [shape = 'u8[1024]{0}', space=vmem, size = 0x400, scoped, tag = 'output window, operand 0, single buffered']
    #allocation4 [shape = 's32[1]{0}', space=sflag, size = 0x4, scoped, tag = 'scoped memory for identification_forward.3']
    %11 = vsyncpa [#allocation4], 0
    // Predicated region
    $region2: #{identification_forward.3} parent=1 // pred_check
      _
    $region3: #{identification_forward.3} parent=1 // pred_check_branch
      %13 = sbr.rel (0) target = $region5
    $region4: #{identification_forward.3} parent=1 // pred_region
      _
    $region5: #{identification_forward.3} parent=1 // pred_fallthru
      _
    // Predicated region
    $region6: #{identification_forward.3} parent=1 // pred_check
      _
    $region7: #{identification_forward.3} parent=1 // pred_check_branch
      %15 = sbr.rel (0) target = $region9
    $region8: #{identification_forward.3} parent=1 // pred_region
      _
    $region9: #{identification_forward.3} parent=1 // pred_fallthru
      _
    // Predicated region
    $region10: #{identification_forward.3} parent=1 // pred_check
      _
    $region11: #{identification_forward.3} parent=1 // pred_check_branch
      %17 = sbr.rel (0) target = $region13
    $region12: #{identification_forward.3} parent=1 // pred_region
      _
    $region13: #{identification_forward.3} parent=1 // pred_fallthru
      _
    // Predicated region
    $region14: #{identification_forward.3} parent=1 // pred_check
      _
    $region15: #{identification_forward.3} parent=1 // pred_check_branch
      %19 = sbr.rel (0) target = $region17
    $region16: #{identification_forward.3} parent=1 // pred_region
      _
    $region17: #{identification_forward.3} parent=1 // pred_fallthru
      _
    // Predicated region
    $region18: #{identification_forward.3} parent=1 // pred_check
      _
    $region19: #{identification_forward.3} parent=1 // pred_check_branch
      %21 = sbr.rel (0) target = $region21
    $region20: #{identification_forward.3} parent=1 // pred_region
      _
    $region21: #{identification_forward.3} parent=1 // pred_fallthru
      _
    // Predicated region
    $region22: #{identification_forward.3} parent=1 // pred_check
      _
    $region23: #{identification_forward.3} parent=1 // pred_check_branch
      %23 = sbr.rel (0) target = $region25
    $region24: #{identification_forward.3} parent=1 // pred_region
      _
    $region25: #{identification_forward.3} parent=1 // pred_fallthru
      _
    %p25 = scmp.eq.s32.totalorder 0, 0
    // Predicated region
    $region26: #{identification_forward.3} parent=1 // pred_check
      %p26 = pneg %p25
    $region27: #{identification_forward.3} parent=1 // pred_check_branch
      %28 = sbr.rel (%p26) target = $region29
    $region28: #{identification_forward.3} parent=1 // pred_region
      %vm29 = vcmask 1041408
      %vm30 = vcmask 584706
      %vm31 = vmor %vm30, %vm29
      %32 = vst.msk [vmem:[#allocation2] sm:$0xf] %vm31, 0.0
    $region29: #{identification_forward.3} parent=1 // pred_fallthru
      _
    %v33 = vld [vmem:[#allocation2] sm:$0xf]
    %v34 = vld [vmem:[%s0] sm:$0x7f]
    %v35 = vld [vmem:[%s1] sm:$0xff]
    %v36 = vld [vmem:[%s1 + $0x8] sm:$0xff]
    %v37 = vld [vmem:[%s1 + $0x10] sm:$0xff]
    %v38 = vld [vmem:[%s1 + $0x18] sm:$0xff]
    %v39 = vld [vmem:[%s1 + $0x20] sm:$0xff]
    %v40 = vld [vmem:[%s1 + $0x28] sm:$0xff]
    %v41 = vld [vmem:[%s1 + $0x30] sm:$0xff]
    %v42 = vld [vmem:[%s1 + $0x38] sm:$0xff]
    %v43 = vld [vmem:[%s1 + $0x40] sm:$0xff]
    %v44 = vld [vmem:[%s1 + $0x48] sm:$0xff]
    %v45 = vld [vmem:[%s1 + $0x50] sm:$0xff]
    %v46 = vld [vmem:[%s1 + $0x58] sm:$0xff]
    %v47 = vld [vmem:[%s1 + $0x60] sm:$0xff]
    %v48 = vld [vmem:[%s1 + $0x68] sm:$0xff]
    %v49 = vld [vmem:[%s1 + $0x70] sm:$0xff]
    %v50 = vld [vmem:[%s1 + $0x78] sm:$0xff]
    %v51 = vld [vmem:[%s1 + $0x80] sm:$0xff]
    %v52 = vld [vmem:[%s1 + $0x88] sm:$0xff]
    %v53 = vld [vmem:[%s1 + $0x90] sm:$0xff]
    %v54 = vld [vmem:[%s1 + $0x98] sm:$0xff]
    %v55 = vld [vmem:[%s1 + $0xa0] sm:$0xff]
    %v56 = vld [vmem:[%s1 + $0xa8] sm:$0xff]
    %v57 = vld [vmem:[%s1 + $0xb0] sm:$0xff]
    %v58 = vld [vmem:[%s1 + $0xb8] sm:$0xff]
    %v59 = vld [vmem:[%s1 + $0xc0] sm:$0xff]
    %v60 = vld [vmem:[%s1 + $0xc8] sm:$0xff]
    %v61 = vld [vmem:[%s1 + $0xd0] sm:$0xff]
    %v62 = vld [vmem:[%s1 + $0xd8] sm:$0xff]
    %v63 = vld [vmem:[%s1 + $0xe0] sm:$0xff]
    %v64 = vld [vmem:[%s1 + $0xe8] sm:$0xff]
    %v65 = vld [vmem:[%s1 + $0xf0] sm:$0xff]
    %v66 = vld [vmem:[%s1 + $0xf8] sm:$0xff]
    %v67 = vld [vmem:[%s1 + $0x100] sm:$0xff]
    %v68 = vld [vmem:[%s1 + $0x108] sm:$0xff]
    %v69 = vld [vmem:[%s1 + $0x110] sm:$0xff]
    %v70 = vld [vmem:[%s1 + $0x118] sm:$0xff]
    %v71 = vld [vmem:[%s1 + $0x120] sm:$0xff]
    %v72 = vld [vmem:[%s1 + $0x128] sm:$0xff]
    %v73 = vld [vmem:[%s1 + $0x130] sm:$0xff]
    %v74 = vld [vmem:[%s1 + $0x138] sm:$0xff]
    %v75 = vld [vmem:[%s1 + $0x140] sm:$0xff]
    %v76 = vld [vmem:[%s1 + $0x148] sm:$0xff]
    %v77 = vld [vmem:[%s1 + $0x150] sm:$0xff]
    %v78 = vld [vmem:[%s1 + $0x158] sm:$0xff]
    %v79 = vld [vmem:[%s1 + $0x160] sm:$0xff]
    %v80 = vld [vmem:[%s1 + $0x168] sm:$0xff]
    %v81 = vld [vmem:[%s1 + $0x170] sm:$0xff]
    %v82 = vld [vmem:[%s1 + $0x178] sm:$0xff]
    %v83 = vld [vmem:[%s1 + $0x180] sm:$0xff]
    %v84 = vld [vmem:[%s1 + $0x188] sm:$0xff]
    %v85 = vld [vmem:[%s1 + $0x190] sm:$0xff]
    %v86 = vld [vmem:[%s1 + $0x198] sm:$0xff]
    %v87 = vld [vmem:[%s1 + $0x1a0] sm:$0xff]
    %v88 = vld [vmem:[%s1 + $0x1a8] sm:$0xff]
    %v89 = vld [vmem:[%s1 + $0x1b0] sm:$0xff]
    %v90 = vld [vmem:[%s1 + $0x1b8] sm:$0xff]
    %v91 = vld [vmem:[%s1 + $0x1c0] sm:$0xff]
    %v92 = vld [vmem:[%s1 + $0x1c8] sm:$0xff]
    %v93 = vld [vmem:[%s1 + $0x1d0] sm:$0xff]
    %v94 = vld [vmem:[%s1 + $0x1d8] sm:$0xff]
    %v95 = vld [vmem:[%s1 + $0x1e0] sm:$0xff]
    %v96 = vld [vmem:[%s1 + $0x1e8] sm:$0xff]
    %v97 = vld [vmem:[%s1 + $0x1f0] sm:$0xff]
    %v98 = vld [vmem:[%s1 + $0x1f8] sm:$0xff]
    %v99 = vld [vmem:[%s1 + $0x200] sm:$0xff]
    %v100 = vld [vmem:[%s1 + $0x208] sm:$0xff]
    %v101 = vld [vmem:[%s1 + $0x210] sm:$0xff]
    %v102 = vld [vmem:[%s1 + $0x218] sm:$0xff]
    %v103 = vld [vmem:[%s1 + $0x220] sm:$0xff]
    %v104 = vld [vmem:[%s1 + $0x228] sm:$0xff]
    %v105 = vld [vmem:[%s1 + $0x230] sm:$0xff]
    %v106 = vld [vmem:[%s1 + $0x238] sm:$0xff]
    %v107 = vld [vmem:[%s1 + $0x240] sm:$0xff]
    %v108 = vld [vmem:[%s1 + $0x248] sm:$0xff]
    %v109 = vld [vmem:[%s1 + $0x250] sm:$0xff]
    %v110 = vld [vmem:[%s1 + $0x258] sm:$0xff]
    %v111 = vld [vmem:[%s1 + $0x260] sm:$0xff]
    %v112 = vld [vmem:[%s1 + $0x268] sm:$0xff]
    %v113 = vld [vmem:[%s1 + $0x270] sm:$0xff]
    %v114 = vld [vmem:[%s1 + $0x278] sm:$0xff]
    %v115 = vld [vmem:[%s1 + $0x280] sm:$0xff]
    %v116 = vld [vmem:[%s1 + $0x288] sm:$0xff]
    %v117 = vld [vmem:[%s1 + $0x290] sm:$0xff]
    %v118 = vld [vmem:[%s1 + $0x298] sm:$0xff]
    %v119 = vld [vmem:[%s1 + $0x2a0] sm:$0xff]
    %v120 = vld [vmem:[%s1 + $0x2a8] sm:$0xff]
    %v121 = vld [vmem:[%s1 + $0x2b0] sm:$0xff]
    %v122 = vld [vmem:[%s1 + $0x2b8] sm:$0xff]
    %v123 = vld [vmem:[%s1 + $0x2c0] sm:$0xff]
    %v124 = vld [vmem:[%s1 + $0x2c8] sm:$0xff]
    %v125 = vld [vmem:[%s1 + $0x2d0] sm:$0xff]
    %v126 = vld [vmem:[%s1 + $0x2d8] sm:$0xff]
    %v127 = vld [vmem:[%s1 + $0x2e0] sm:$0xff]
    %v128 = vld [vmem:[%s1 + $0x2e8] sm:$0xff]
    %v129 = vld [vmem:[%s1 + $0x2f0] sm:$0xff]
    %v130 = vld [vmem:[%s1 + $0x2f8] sm:$0xff]
    %v131 = vld [vmem:[%s1 + $0x300] sm:$0xff]
    %v132 = vld [vmem:[%s1 + $0x308] sm:$0xff]
    %v133 = vld [vmem:[%s1 + $0x310] sm:$0xff]
    %v134 = vld [vmem:[%s1 + $0x318] sm:$0xff]
    %v135 = vld [vmem:[%s1 + $0x320] sm:$0xff]
    %v136 = vld [vmem:[%s1 + $0x328] sm:$0xff]
    %v137 = vld [vmem:[%s1 + $0x330] sm:$0xff]
    %v138 = vld [vmem:[%s1 + $0x338] sm:$0xff]
    %v139 = vld [vmem:[%s1 + $0x340] sm:$0xff]
    %v140 = vld [vmem:[%s1 + $0x348] sm:$0xff]
    %v141 = vld [vmem:[%s1 + $0x350] sm:$0xff]
    %v142 = vld [vmem:[%s1 + $0x358] sm:$0xff]
    %v143 = vld [vmem:[%s1 + $0x360] sm:$0xff]
    %v144 = vld [vmem:[%s1 + $0x368] sm:$0xff]
    %v145 = vld [vmem:[%s1 + $0x370] sm:$0xff]
    %v146 = vld [vmem:[%s1 + $0x378] sm:$0xff]
    %v148 = vcombine.high %v34, %v34
    %v150 = vunpack.c.l.s4 1966171168
    %v151 = vunpack.c.0.s8 %v150
    %v152 = vlaneseq
    %v153 = vshrl.u32 %v152, 7
    %v154 = vsub.s32 %v151, %v153
    %v155 = vrot.slane %v34, %v154
    %v157 = vunpack.c.l.s4 1966171168
    %v158 = vunpack.c.0.s8 %v157
    %v159 = vlaneseq
    %v160 = vshrl.u32 %v159, 7
    %v161 = vsub.s32 %v158, %v160
    %v162 = vrot.slane %v148, %v161
    %v163 = vcombine.high %v155, %v155
    %v164 = vcombine.high %v162, %v162
    %v166 = vunpack.c.l.s4 1966171168
    %v167 = vunpack.c.0.s8 %v166
    %v168 = vlaneseq
    %v169 = vshrl.u32 %v168, 7
    %v170 = vsub.s32 %v167, %v169
    %v171 = vrot.slane %v155, %v170
    %v173 = vunpack.c.l.s4 1966171168
    %v174 = vunpack.c.0.s8 %v173
    %v175 = vlaneseq
    %v176 = vshrl.u32 %v175, 7
    %v177 = vsub.s32 %v174, %v176
    %v178 = vrot.slane %v162, %v177
    %v180 = vunpack.c.l.s4 1966171168
    %v181 = vunpack.c.0.s8 %v180
    %v182 = vlaneseq
    %v183 = vshrl.u32 %v182, 7
    %v184 = vsub.s32 %v181, %v183
    %v185 = vrot.slane %v163, %v184
    %v187 = vunpack.c.l.s4 1966171168
    %v188 = vunpack.c.0.s8 %v187
    %v189 = vlaneseq
    %v190 = vshrl.u32 %v189, 7
    %v191 = vsub.s32 %v188, %v190
    %v192 = vrot.slane %v164, %v191
    %v193 = vcombine.high %v171, %v171
    %v194 = vcombine.high %v178, %v178
    %v195 = vcombine.high %v185, %v185
    %v315 = vunpack.c.l.b16 %v35
    %v316 = vunpack.c.h.b16 %v35
    %v317 = vunpack.c.l.b16 %v36
    %v318 = vunpack.c.h.b16 %v36
    %v319 = vunpack.c.l.b16 %v37
    %v320 = vunpack.c.h.b16 %v37
    %v321 = vunpack.c.l.b16 %v38
    %v322 = vunpack.c.h.b16 %v38
    %v323 = vunpack.c.l.b16 %v39
    %v324 = vunpack.c.h.b16 %v39
    %v325 = vunpack.c.l.b16 %v40
    %v326 = vunpack.c.h.b16 %v40
    %v327 = vunpack.c.l.b16 %v41
    %v328 = vunpack.c.h.b16 %v41
    %v329 = vunpack.c.l.b16 %v42
    %v330 = vunpack.c.h.b16 %v42
    %v331 = vunpack.c.l.b16 %v43
    %v332 = vunpack.c.h.b16 %v43
    %v333 = vunpack.c.l.b16 %v44
    %v334 = vunpack.c.h.b16 %v44
    %v335 = vunpack.c.l.b16 %v45
    %v336 = vunpack.c.h.b16 %v45
    %v337 = vunpack.c.l.b16 %v46
    %v338 = vunpack.c.h.b16 %v46
    %v339 = vunpack.c.l.b16 %v47
    %v340 = vunpack.c.h.b16 %v47
    %v341 = vunpack.c.l.b16 %v48
    %v342 = vunpack.c.h.b16 %v48
    %v343 = vunpack.c.l.b16 %v49
    %v344 = vunpack.c.h.b16 %v49
    %v345 = vunpack.c.l.b16 %v50
    %v346 = vunpack.c.h.b16 %v50
    %v347 = vunpack.c.l.b16 %v51
    %v348 = vunpack.c.h.b16 %v51
    %v349 = vunpack.c.l.b16 %v52
    %v350 = vunpack.c.h.b16 %v52
    %v351 = vunpack.c.l.b16 %v53
    %v352 = vunpack.c.h.b16 %v53
    %v353 = vunpack.c.l.b16 %v54
    %v354 = vunpack.c.h.b16 %v54
    %v355 = vunpack.c.l.b16 %v55
    %v356 = vunpack.c.h.b16 %v55
    %v357 = vunpack.c.l.b16 %v56
    %v358 = vunpack.c.h.b16 %v56
    %v359 = vunpack.c.l.b16 %v57
    %v360 = vunpack.c.h.b16 %v57
    %v361 = vunpack.c.l.b16 %v58
    %v362 = vunpack.c.h.b16 %v58
    %v363 = vunpack.c.l.b16 %v59
    %v364 = vunpack.c.h.b16 %v59
    %v365 = vunpack.c.l.b16 %v60
    %v366 = vunpack.c.h.b16 %v60
    %v367 = vunpack.c.l.b16 %v61
    %v368 = vunpack.c.h.b16 %v61
    %v369 = vunpack.c.l.b16 %v62
    %v370 = vunpack.c.h.b16 %v62
    %v371 = vunpack.c.l.b16 %v63
    %v372 = vunpack.c.h.b16 %v63
    %v373 = vunpack.c.l.b16 %v64
    %v374 = vunpack.c.h.b16 %v64
    %v375 = vunpack.c.l.b16 %v65
    %v376 = vunpack.c.h.b16 %v65
    %v377 = vunpack.c.l.b16 %v66
    %v378 = vunpack.c.h.b16 %v66
    %v379 = vunpack.c.l.b16 %v67
    %v380 = vunpack.c.h.b16 %v67
    %v381 = vunpack.c.l.b16 %v68
    %v382 = vunpack.c.h.b16 %v68
    %v383 = vunpack.c.l.b16 %v69
    %v384 = vunpack.c.h.b16 %v69
    %v385 = vunpack.c.l.b16 %v70
    %v386 = vunpack.c.h.b16 %v70
    %v387 = vunpack.c.l.b16 %v71
    %v388 = vunpack.c.h.b16 %v71
    %v389 = vunpack.c.l.b16 %v72
    %v390 = vunpack.c.h.b16 %v72
    %v391 = vunpack.c.l.b16 %v73
    %v392 = vunpack.c.h.b16 %v73
    %v393 = vunpack.c.l.b16 %v74
    %v394 = vunpack.c.h.b16 %v74
    %v395 = vunpack.c.l.b16 %v75
    %v396 = vunpack.c.h.b16 %v75
    %v397 = vunpack.c.l.b16 %v76
    %v398 = vunpack.c.h.b16 %v76
    %v399 = vunpack.c.l.b16 %v77
    %v400 = vunpack.c.h.b16 %v77
    %v401 = vunpack.c.l.b16 %v78
    %v402 = vunpack.c.h.b16 %v78
    %v403 = vunpack.c.l.b16 %v79
    %v404 = vunpack.c.h.b16 %v79
    %v405 = vunpack.c.l.b16 %v80
    %v406 = vunpack.c.h.b16 %v80
    %v407 = vunpack.c.l.b16 %v81
    %v408 = vunpack.c.h.b16 %v81
    %v409 = vunpack.c.l.b16 %v82
    %v410 = vunpack.c.h.b16 %v82
    %v411 = vunpack.c.l.b16 %v83
    %v412 = vunpack.c.h.b16 %v83
    %v413 = vunpack.c.l.b16 %v84
    %v414 = vunpack.c.h.b16 %v84
    %v415 = vunpack.c.l.b16 %v85
    %v416 = vunpack.c.h.b16 %v85
    %v417 = vunpack.c.l.b16 %v86
    %v418 = vunpack.c.h.b16 %v86
    %v419 = vunpack.c.l.b16 %v87
    %v420 = vunpack.c.h.b16 %v87
    %v421 = vunpack.c.l.b16 %v88
    %v422 = vunpack.c.h.b16 %v88
    %v423 = vunpack.c.l.b16 %v89
    %v424 = vunpack.c.h.b16 %v89
    %v425 = vunpack.c.l.b16 %v90
    %v426 = vunpack.c.h.b16 %v90
    %v427 = vunpack.c.l.b16 %v91
    %v428 = vunpack.c.h.b16 %v91
    %v429 = vunpack.c.l.b16 %v92
    %v430 = vunpack.c.h.b16 %v92
    %v431 = vunpack.c.l.b16 %v93
    %v432 = vunpack.c.h.b16 %v93
    %v433 = vunpack.c.l.b16 %v94
    %v434 = vunpack.c.h.b16 %v94
    %v435 = vunpack.c.l.b16 %v95
    %v436 = vunpack.c.h.b16 %v95
    %v437 = vunpack.c.l.b16 %v96
    %v438 = vunpack.c.h.b16 %v96
    %v439 = vunpack.c.l.b16 %v97
    %v440 = vunpack.c.h.b16 %v97
    %v441 = vunpack.c.l.b16 %v98
    %v442 = vunpack.c.h.b16 %v98
    %v443 = vunpack.c.l.b16 %v99
    %v444 = vunpack.c.h.b16 %v99
    %v445 = vunpack.c.l.b16 %v100
    %v446 = vunpack.c.h.b16 %v100
    %v447 = vunpack.c.l.b16 %v101
    %v448 = vunpack.c.h.b16 %v101
    %v449 = vunpack.c.l.b16 %v102
    %v450 = vunpack.c.h.b16 %v102
    %v451 = vunpack.c.l.b16 %v103
    %v452 = vunpack.c.h.b16 %v103
    %v453 = vunpack.c.l.b16 %v104
    %v454 = vunpack.c.h.b16 %v104
    %v455 = vunpack.c.l.b16 %v105
    %v456 = vunpack.c.h.b16 %v105
    %v457 = vunpack.c.l.b16 %v106
    %v458 = vunpack.c.h.b16 %v106
    %v459 = vunpack.c.l.b16 %v107
    %v460 = vunpack.c.h.b16 %v107
    %v461 = vunpack.c.l.b16 %v108
    %v462 = vunpack.c.h.b16 %v108
    %v463 = vunpack.c.l.b16 %v109
    %v464 = vunpack.c.h.b16 %v109
    %v465 = vunpack.c.l.b16 %v110
    %v466 = vunpack.c.h.b16 %v110
    %v467 = vunpack.c.l.b16 %v111
    %v468 = vunpack.c.h.b16 %v111
    %v469 = vunpack.c.l.b16 %v112
    %v470 = vunpack.c.h.b16 %v112
    %v471 = vunpack.c.l.b16 %v113
    %v472 = vunpack.c.h.b16 %v113
    %v473 = vunpack.c.l.b16 %v114
    %v474 = vunpack.c.h.b16 %v114
    %v475 = vunpack.c.l.b16 %v115
    %v476 = vunpack.c.h.b16 %v115
    %v477 = vunpack.c.l.b16 %v116
    %v478 = vunpack.c.h.b16 %v116
    %v479 = vunpack.c.l.b16 %v117
    %v480 = vunpack.c.h.b16 %v117
    %v481 = vunpack.c.l.b16 %v118
    %v482 = vunpack.c.h.b16 %v118
    %v483 = vunpack.c.l.b16 %v119
    %v484 = vunpack.c.h.b16 %v119
    %v485 = vunpack.c.l.b16 %v120
    %v486 = vunpack.c.h.b16 %v120
    %v487 = vunpack.c.l.b16 %v121
    %v488 = vunpack.c.h.b16 %v121
    %v489 = vunpack.c.l.b16 %v122
    %v490 = vunpack.c.h.b16 %v122
    %v491 = vunpack.c.l.b16 %v123
    %v492 = vunpack.c.h.b16 %v123
    %v493 = vunpack.c.l.b16 %v124
    %v494 = vunpack.c.h.b16 %v124
    %v495 = vunpack.c.l.b16 %v125
    %v496 = vunpack.c.h.b16 %v125
    %v497 = vunpack.c.l.b16 %v126
    %v498 = vunpack.c.h.b16 %v126
    %v499 = vunpack.c.l.b16 %v127
    %v500 = vunpack.c.h.b16 %v127
    %v501 = vunpack.c.l.b16 %v128
    %v502 = vunpack.c.h.b16 %v128
    %v503 = vunpack.c.l.b16 %v129
    %v504 = vunpack.c.h.b16 %v129
    %v505 = vunpack.c.l.b16 %v130
    %v506 = vunpack.c.h.b16 %v130
    %v507 = vunpack.c.l.b16 %v131
    %v508 = vunpack.c.h.b16 %v131
    %v509 = vunpack.c.l.b16 %v132
    %v510 = vunpack.c.h.b16 %v132
    %v511 = vunpack.c.l.b16 %v133
    %v512 = vunpack.c.h.b16 %v133
    %v513 = vunpack.c.l.b16 %v134
    %v514 = vunpack.c.h.b16 %v134
    %v515 = vunpack.c.l.b16 %v135
    %v516 = vunpack.c.h.b16 %v135
    %v517 = vunpack.c.l.b16 %v136
    %v518 = vunpack.c.h.b16 %v136
    %v519 = vunpack.c.l.b16 %v137
    %v520 = vunpack.c.h.b16 %v137
    %v521 = vunpack.c.l.b16 %v138
    %v522 = vunpack.c.h.b16 %v138
    %v523 = vunpack.c.l.b16 %v139
    %v524 = vunpack.c.h.b16 %v139
    %v525 = vunpack.c.l.b16 %v140
    %v526 = vunpack.c.h.b16 %v140
    %v527 = vunpack.c.l.b16 %v141
    %v528 = vunpack.c.h.b16 %v141
    %v529 = vunpack.c.l.b16 %v142
    %v530 = vunpack.c.h.b16 %v142
    %v531 = vunpack.c.l.b16 %v143
    %v532 = vunpack.c.h.b16 %v143
    %v533 = vunpack.c.l.b16 %v144
    %v534 = vunpack.c.h.b16 %v144
    %v535 = vunpack.c.l.b16 %v145
    %v536 = vunpack.c.h.b16 %v145
    %v537 = vunpack.c.l.b16 %v146
    %v538 = vunpack.c.h.b16 %v146
    %v539 = vpack.c.b16 %v317, %v315
    %v540 = vpack.c.b16 %v318, %v316
    %v541 = vpack.c.b16 %v321, %v319
    %v542 = vpack.c.b16 %v322, %v320
    %v543 = vpack.c.b16 %v325, %v323
    %v544 = vpack.c.b16 %v326, %v324
    %v545 = vpack.c.b16 %v329, %v327
    %v546 = vpack.c.b16 %v330, %v328
    %v547 = vpack.c.b16 %v333, %v331
    %v548 = vpack.c.b16 %v334, %v332
    %v549 = vpack.c.b16 %v337, %v335
    %v550 = vpack.c.b16 %v338, %v336
    %v551 = vpack.c.b16 %v341, %v339
    %v552 = vpack.c.b16 %v342, %v340
    %v553 = vpack.c.b16 %v345, %v343
    %v554 = vpack.c.b16 %v346, %v344
    %v555 = vpack.c.b16 %v349, %v347
    %v556 = vpack.c.b16 %v350, %v348
    %v557 = vpack.c.b16 %v353, %v351
    %v558 = vpack.c.b16 %v354, %v352
    %v559 = vpack.c.b16 %v357, %v355
    %v560 = vpack.c.b16 %v358, %v356
    %v561 = vpack.c.b16 %v361, %v359
    %v562 = vpack.c.b16 %v362, %v360
    %v563 = vpack.c.b16 %v365, %v363
    %v564 = vpack.c.b16 %v366, %v364
    %v565 = vpack.c.b16 %v369, %v367
    %v566 = vpack.c.b16 %v370, %v368
    %v567 = vpack.c.b16 %v373, %v371
    %v568 = vpack.c.b16 %v374, %v372
    %v569 = vpack.c.b16 %v377, %v375
    %v570 = vpack.c.b16 %v378, %v376
    %v571 = vpack.c.b16 %v381, %v379
    %v572 = vpack.c.b16 %v382, %v380
    %v573 = vpack.c.b16 %v385, %v383
    %v574 = vpack.c.b16 %v386, %v384
    %v575 = vpack.c.b16 %v389, %v387
    %v576 = vpack.c.b16 %v390, %v388
    %v577 = vpack.c.b16 %v393, %v391
    %v578 = vpack.c.b16 %v394, %v392
    %v579 = vpack.c.b16 %v397, %v395
    %v580 = vpack.c.b16 %v398, %v396
    %v581 = vpack.c.b16 %v401, %v399
    %v582 = vpack.c.b16 %v402, %v400
    %v583 = vpack.c.b16 %v405, %v403
    %v584 = vpack.c.b16 %v406, %v404
    %v585 = vpack.c.b16 %v409, %v407
    %v586 = vpack.c.b16 %v410, %v408
    %v587 = vpack.c.b16 %v413, %v411
    %v588 = vpack.c.b16 %v414, %v412
    %v589 = vpack.c.b16 %v417, %v415
    %v590 = vpack.c.b16 %v418, %v416
    %v591 = vpack.c.b16 %v421, %v419
    %v592 = vpack.c.b16 %v422, %v420
    %v593 = vpack.c.b16 %v425, %v423
    %v594 = vpack.c.b16 %v426, %v424
    %v595 = vpack.c.b16 %v429, %v427
    %v596 = vpack.c.b16 %v430, %v428
    %v597 = vpack.c.b16 %v433, %v431
    %v598 = vpack.c.b16 %v434, %v432
    %v599 = vpack.c.b16 %v437, %v435
    %v600 = vpack.c.b16 %v438, %v436
    %v601 = vpack.c.b16 %v441, %v439
    %v602 = vpack.c.b16 %v442, %v440
    %v603 = vpack.c.b16 %v445, %v443
    %v604 = vpack.c.b16 %v446, %v444
    %v605 = vpack.c.b16 %v449, %v447
    %v606 = vpack.c.b16 %v450, %v448
    %v607 = vpack.c.b16 %v453, %v451
    %v608 = vpack.c.b16 %v454, %v452
    %v609 = vpack.c.b16 %v457, %v455
    %v610 = vpack.c.b16 %v458, %v456
    %v611 = vpack.c.b16 %v461, %v459
    %v612 = vpack.c.b16 %v462, %v460
    %v613 = vpack.c.b16 %v465, %v463
    %v614 = vpack.c.b16 %v466, %v464
    %v615 = vpack.c.b16 %v469, %v467
    %v616 = vpack.c.b16 %v470, %v468
    %v617 = vpack.c.b16 %v473, %v471
    %v618 = vpack.c.b16 %v474, %v472
    %v619 = vpack.c.b16 %v477, %v475
    %v620 = vpack.c.b16 %v478, %v476
    %v621 = vpack.c.b16 %v481, %v479
    %v622 = vpack.c.b16 %v482, %v480
    %v623 = vpack.c.b16 %v485, %v483
    %v624 = vpack.c.b16 %v486, %v484
    %v625 = vpack.c.b16 %v489, %v487
    %v626 = vpack.c.b16 %v490, %v488
    %v627 = vpack.c.b16 %v493, %v491
    %v628 = vpack.c.b16 %v494, %v492
    %v629 = vpack.c.b16 %v497, %v495
    %v630 = vpack.c.b16 %v498, %v496
    %v631 = vpack.c.b16 %v501, %v499
    %v632 = vpack.c.b16 %v502, %v500
    %v633 = vpack.c.b16 %v505, %v503
    %v634 = vpack.c.b16 %v506, %v504
    %v635 = vpack.c.b16 %v509, %v507
    %v636 = vpack.c.b16 %v510, %v508
    %v637 = vpack.c.b16 %v513, %v511
    %v638 = vpack.c.b16 %v514, %v512
    %v639 = vpack.c.b16 %v517, %v515
    %v640 = vpack.c.b16 %v518, %v516
    %v641 = vpack.c.b16 %v521, %v519
    %v642 = vpack.c.b16 %v522, %v520
    %v643 = vpack.c.b16 %v525, %v523
    %v644 = vpack.c.b16 %v526, %v524
    %v645 = vpack.c.b16 %v529, %v527
    %v646 = vpack.c.b16 %v530, %v528
    %v647 = vpack.c.b16 %v533, %v531
    %v648 = vpack.c.b16 %v534, %v532
    %v649 = vpack.c.b16 %v537, %v535
    %v650 = vpack.c.b16 %v538, %v536
    %763 = vmatprep.subr.bf16.mxu0 %v540
    %764 = vmatpush1.bf16.msra.mxu0 %v539
    %765 = vmatprep.subr.bf16.mxu0 %v542
    %766 = vmatpush1.bf16.msra.mxu0 %v541
    %767 = vmatprep.subr.bf16.mxu0 %v544
    %768 = vmatpush1.bf16.msra.mxu0 %v543
    %769 = vmatprep.subr.bf16.mxu0 %v546
    %770 = vmatpush1.bf16.msra.mxu0 %v545
    %771 = vmatprep.subr.bf16.mxu0 %v548
    %772 = vmatpush1.bf16.msra.mxu0 %v547
    %773 = vmatprep.subr.bf16.mxu0 %v550
    %774 = vmatpush1.bf16.msra.mxu0 %v549
    %775 = vmatprep.subr.bf16.mxu0 %v552
    %776 = vmatpush1.bf16.msra.mxu0 %v551
    %777 = vmatprep.subr.bf16.mxu0 %v554
    %778 = vmatpush1.bf16.msra.mxu0 %v553
    %779 = vmatprep.subr.bf16.mxu0 %v556
    %780 = vmatpush1.bf16.msra.mxu0 %v555
    %781 = vmatprep.subr.bf16.mxu0 %v558
    %782 = vmatpush1.bf16.msra.mxu0 %v557
    %783 = vmatprep.subr.bf16.mxu0 %v560
    %784 = vmatpush1.bf16.msra.mxu0 %v559
    %785 = vmatprep.subr.bf16.mxu0 %v562
    %786 = vmatpush1.bf16.msra.mxu0 %v561
    %787 = vmatprep.subr.bf16.mxu0 %v564
    %788 = vmatpush1.bf16.msra.mxu0 %v563
    %789 = vmatprep.subr.bf16.mxu0 %v566
    %790 = vmatpush1.bf16.msra.mxu0 %v565
    %791 = vmatprep.subr.bf16.mxu0 %v568
    %792 = vmatpush1.bf16.msra.mxu0 %v567
    %793 = vmatprep.subr.bf16.mxu0 %v570
    %794 = vmatpush1.bf16.msra.mxu0 %v569
    %795 = vmatprep.mubr.bf16.mxu0 %v185
    %796 = vmatmul.mubr.bf16.gmra.mrb[0].mxu0 %v171
    %v797 = vpop.f32.mrb[0].mxu0
    %v798 = vadd.f32 0.0, %v797
    %v799 = vpop.f32.mrb[0].mxu0
    %v800 = vadd.f32 0.0, %v799
    %v801 = vpop.f32.mrb[0].mxu0
    %v802 = vpop.f32.mrb[0].mxu0
    %803 = vdwg.mxu0
    %804 = vmatprep.subr.bf16.mxu0 %v572
    %805 = vmatpush1.bf16.msra.mxu0 %v571
    %806 = vmatprep.subr.bf16.mxu0 %v574
    %807 = vmatpush1.bf16.msra.mxu0 %v573
    %808 = vmatprep.subr.bf16.mxu0 %v576
    %809 = vmatpush1.bf16.msra.mxu0 %v575
    %810 = vmatprep.subr.bf16.mxu0 %v578
    %811 = vmatpush1.bf16.msra.mxu0 %v577
    %812 = vmatprep.subr.bf16.mxu0 %v580
    %813 = vmatpush1.bf16.msra.mxu0 %v579
    %814 = vmatprep.subr.bf16.mxu0 %v582
    %815 = vmatpush1.bf16.msra.mxu0 %v581
    %816 = vmatprep.subr.bf16.mxu0 %v584
    %817 = vmatpush1.bf16.msra.mxu0 %v583
    %818 = vmatprep.subr.bf16.mxu0 %v586
    %819 = vmatpush1.bf16.msra.mxu0 %v585
    %820 = vmatprep.subr.bf16.mxu0 %v588
    %821 = vmatpush1.bf16.msra.mxu0 %v587
    %822 = vmatprep.subr.bf16.mxu0 %v590
    %823 = vmatpush1.bf16.msra.mxu0 %v589
    %824 = vmatprep.subr.bf16.mxu0 %v592
    %825 = vmatpush1.bf16.msra.mxu0 %v591
    %826 = vmatprep.subr.bf16.mxu0 %v594
    %827 = vmatpush1.bf16.msra.mxu0 %v593
    %828 = vmatprep.subr.bf16.mxu0 %v596
    %829 = vmatpush1.bf16.msra.mxu0 %v595
    %830 = vmatprep.subr.bf16.mxu0 %v598
    %831 = vmatpush1.bf16.msra.mxu0 %v597
    %832 = vmatprep.subr.bf16.mxu0 %v600
    %833 = vmatpush1.bf16.msra.mxu0 %v599
    %834 = vmatprep.subr.bf16.mxu0 %v602
    %835 = vmatpush1.bf16.msra.mxu0 %v601
    %836 = vmatprep.mubr.bf16.mxu0 %v195
    %837 = vmatmul.mubr.bf16.gmra.mrb[0].mxu0 %v193
    %v838 = vpop.f32.mrb[0].mxu0
    %v839 = vadd.f32 %v798, %v838
    %v840 = vpop.f32.mrb[0].mxu0
    %v841 = vadd.f32 %v800, %v840
    %v842 = vpop.f32.mrb[0].mxu0
    %v843 = vpop.f32.mrb[0].mxu0
    %844 = vdwg.mxu0
    %845 = vmatprep.subr.bf16.mxu0 %v604
    %846 = vmatpush1.bf16.msra.mxu0 %v603
    %847 = vmatprep.subr.bf16.mxu0 %v606
    %848 = vmatpush1.bf16.msra.mxu0 %v605
    %849 = vmatprep.subr.bf16.mxu0 %v608
    %850 = vmatpush1.bf16.msra.mxu0 %v607
    %851 = vmatprep.subr.bf16.mxu0 %v610
    %852 = vmatpush1.bf16.msra.mxu0 %v609
    %853 = vmatprep.subr.bf16.mxu0 %v612
    %854 = vmatpush1.bf16.msra.mxu0 %v611
    %855 = vmatprep.subr.bf16.mxu0 %v614
    %856 = vmatpush1.bf16.msra.mxu0 %v613
    %857 = vmatprep.subr.bf16.mxu0 %v616
    %858 = vmatpush1.bf16.msra.mxu0 %v615
    %859 = vmatprep.subr.bf16.mxu0 %v618
    %860 = vmatpush1.bf16.msra.mxu0 %v617
    %861 = vmatprep.subr.bf16.mxu0 %v620
    %862 = vmatpush1.bf16.msra.mxu0 %v619
    %863 = vmatprep.subr.bf16.mxu0 %v622
    %864 = vmatpush1.bf16.msra.mxu0 %v621
    %865 = vmatprep.subr.bf16.mxu0 %v624
    %866 = vmatpush1.bf16.msra.mxu0 %v623
    %867 = vmatprep.subr.bf16.mxu0 %v626
    %868 = vmatpush1.bf16.msra.mxu0 %v625
    %869 = vmatprep.subr.bf16.mxu0 %v628
    %870 = vmatpush1.bf16.msra.mxu0 %v627
    %871 = vmatprep.subr.bf16.mxu0 %v630
    %872 = vmatpush1.bf16.msra.mxu0 %v629
    %873 = vmatprep.subr.bf16.mxu0 %v632
    %874 = vmatpush1.bf16.msra.mxu0 %v631
    %875 = vmatprep.subr.bf16.mxu0 %v634
    %876 = vmatpush1.bf16.msra.mxu0 %v633
    %877 = vmatprep.mubr.bf16.mxu0 %v192
    %878 = vmatmul.mubr.bf16.gmra.mrb[0].mxu0 %v178
    %v879 = vpop.f32.mrb[0].mxu0
    %v880 = vadd.f32 %v839, %v879
    %v881 = vpop.f32.mrb[0].mxu0
    %v882 = vadd.f32 %v841, %v881
    %v883 = vpop.f32.mrb[0].mxu0
    %v884 = vpop.f32.mrb[0].mxu0
    %885 = vdwg.mxu0
    %886 = vmatprep.subr.bf16.mxu0 %v636
    %887 = vmatpush1.bf16.msra.mxu0 %v635
    %888 = vmatprep.subr.bf16.mxu0 %v638
    %889 = vmatpush1.bf16.msra.mxu0 %v637
    %890 = vmatprep.subr.bf16.mxu0 %v640
    %891 = vmatpush1.bf16.msra.mxu0 %v639
    %892 = vmatprep.subr.bf16.mxu0 %v642
    %893 = vmatpush1.bf16.msra.mxu0 %v641
    %894 = vmatprep.subr.bf16.mxu0 %v644
    %895 = vmatpush1.bf16.msra.mxu0 %v643
    %896 = vmatprep.subr.bf16.mxu0 %v646
    %897 = vmatpush1.bf16.msra.mxu0 %v645
    %898 = vmatprep.subr.bf16.mxu0 %v648
    %899 = vmatpush1.bf16.msra.mxu0 %v647
    %900 = vmatprep.subr.bf16.mxu0 %v650
    %901 = vmatpush1.bf16.msra.mxu0 %v649
    %902 = vmatprep.subr.bf16.mxu0 0
    %903 = vmatpush1.bf16.msra.mxu0 0
    %904 = vmatprep.subr.bf16.mxu0 0
    %905 = vmatpush1.bf16.msra.mxu0 0
    %906 = vmatprep.subr.bf16.mxu0 0
    %907 = vmatpush1.bf16.msra.mxu0 0
    %908 = vmatprep.subr.bf16.mxu0 0
    %909 = vmatpush1.bf16.msra.mxu0 0
    %910 = vmatprep.subr.bf16.mxu0 0
    %911 = vmatpush1.bf16.msra.mxu0 0
    %912 = vmatprep.subr.bf16.mxu0 0
    %913 = vmatpush1.bf16.msra.mxu0 0
    %914 = vmatprep.subr.bf16.mxu0 0
    %915 = vmatpush1.bf16.msra.mxu0 0
    %916 = vmatprep.subr.bf16.mxu0 0
    %917 = vmatpush1.bf16.msra.mxu0 0
    %918 = vmatprep.mubr.bf16.mxu0 0
    %919 = vmatmul.mubr.bf16.gmra.mrb[0].mxu0 %v194
    %v920 = vpop.f32.mrb[0].mxu0
    %v921 = vadd.f32 %v880, %v920
    %v922 = vpop.f32.mrb[0].mxu0
    %v923 = vadd.f32 %v882, %v922
    %v924 = vpop.f32.mrb[0].mxu0
    %v925 = vpop.f32.mrb[0].mxu0
    %926 = vdwg.mxu0
    %v929 = vcombine.low %v921, %v923
    %v931 = vunpack.c.l.s4 1983009808
    %v932 = vunpack.c.0.s8 %v931
    %v933 = vlaneseq
    %v934 = vshrl.u32 %v933, 7
    %v935 = vsub.s32 %v932, %v934
    %v936 = vrot.slane %v929, %v935
    %v938 = vadd.f32 %v33, %v936
    %vm939 = vcmask 1041408
    %vm940 = vcmask 584706
    %vm941 = vmor %vm940, %vm939
    %942 = vst.msk [vmem:[#allocation2] sm:$0xf] %vm941, %v938
    // Predicated region
    $region30: #{identification_forward.3} parent=1 // pred_check
      %p943 = pneg %p25
    $region31: #{identification_forward.3} parent=1 // pred_check_branch
      %945 = sbr.rel (%p943) target = $region33
    $region32: #{identification_forward.3} parent=1 // pred_region
      %v946 = vld [vmem:[#allocation2] sm:$0xf]
      %v947 = vld [vmem:[%s2] sm:$0x3]
      %v949 = vlaneseq
      %v950 = vshrl.u32 %v949, 7
      %v951 = vsub.s32 0, %v950
      %v952 = vrot.slane %v947, %v951
      %v953 = vlaneseq
      %v954 = vshrl.u32 %v953, 7
      %v955 = vsub.s32 1, %v954
      %v956 = vrot.slane %v947, %v955
      %v957 = vcombine.low %v952, %v956
      %v959 = vunpack.c.l.s4 1983009808
      %v960 = vunpack.c.0.s8 %v959
      %v961 = vlaneseq
      %v962 = vshrl.u32 %v961, 7
      %v963 = vsub.s32 %v960, %v962
      %v964 = vrot.slane %v957, %v963
      %v966 = vadd.f32 %v946, %v964
      %v967 = vtanh.pop %v966
      %v970 = vunpack.c.l.s4 1983009808
      %v971 = vunpack.c.0.s8 %v970
      %v972 = vlaneseq
      %v973 = vshrl.u32 %v972, 7
      %v974 = vsub.s32 %v971, %v973
      %v975 = vrot.slane %v967, %v974
      %v976 = vcombine.high %v975, %v975
      %v979 = vsel %vm939, %v975, 0.0
      %v980 = vrot.slane %v979, 4
      %v981 = vadd.f32 %v979, %v980
      %v982 = vrot.slane %v981, 2
      %v983 = vadd.f32 %v981, %v982
      %v984 = vrot.slane %v983, 1
      %v985 = vadd.f32 %v983, %v984
      %vm986 = vcmask 582656
      %v987 = vsel %vm986, %v976, 0.0
      %v988 = vrot.slane %v987, 4
      %v989 = vadd.f32 %v987, %v988
      %v990 = vrot.slane %v989, 2
      %v991 = vadd.f32 %v989, %v990
      %v992 = vrot.slane %v991, 1
      %v993 = vadd.f32 %v991, %v992
      %v994 = vrcp.pop 2.0
      %v995 = vmul.f32 %v985, %v994
      %v996 = vmul.f32 %v993, %v994
      %v999 = vcombine.low %v995, %v996
      %v1001 = vunpack.c.l.s4 1983009808
      %v1002 = vunpack.c.0.s8 %v1001
      %v1003 = vlaneseq
      %v1004 = vshrl.u32 %v1003, 7
      %v1005 = vsub.s32 %v1002, %v1004
      %v1006 = vrot.slane %v999, %v1005
      %v1008 = vsub.f32 %v967, %v1006
      %v1009 = vmul.f32 %v1008, %v1008
      %v1012 = vunpack.c.l.s4 1983009808
      %v1013 = vunpack.c.0.s8 %v1012
      %v1014 = vlaneseq
      %v1015 = vshrl.u32 %v1014, 7
      %v1016 = vsub.s32 %v1013, %v1015
      %v1017 = vrot.slane %v1009, %v1016
      %v1018 = vcombine.high %v1017, %v1017
      %v1021 = vsel %vm939, %v1017, 0.0
      %v1022 = vrot.slane %v1021, 4
      %v1023 = vadd.f32 %v1021, %v1022
      %v1024 = vrot.slane %v1023, 2
      %v1025 = vadd.f32 %v1023, %v1024
      %v1026 = vrot.slane %v1025, 1
      %v1027 = vadd.f32 %v1025, %v1026
      %v1028 = vsel %vm986, %v1018, 0.0
      %v1029 = vrot.slane %v1028, 4
      %v1030 = vadd.f32 %v1028, %v1029
      %v1031 = vrot.slane %v1030, 2
      %v1032 = vadd.f32 %v1030, %v1031
      %v1033 = vrot.slane %v1032, 1
      %v1034 = vadd.f32 %v1032, %v1033
      %v1035 = vmul.f32 %v1027, %v994
      %v1036 = vmul.f32 %v1034, %v994
      %v1037 = vadd.f32 %v1035, 1e-05
      %v1038 = vadd.f32 %v1036, 1e-05
      %v1039 = vrsqrt.pop %v1037
      %v1040 = vrsqrt.pop %v1038
      %v1043 = vcombine.low %v1039, %v1040
      %v1045 = vunpack.c.l.s4 1983009808
      %v1046 = vunpack.c.0.s8 %v1045
      %v1047 = vlaneseq
      %v1048 = vshrl.u32 %v1047, 7
      %v1049 = vsub.s32 %v1046, %v1048
      %v1050 = vrot.slane %v1043, %v1049
      %v1052 = vmul.f32 %v1008, %v1050
      %v1053 = vld [vmem:[%s3] sm:$0x3]
      %v1055 = vlaneseq
      %v1056 = vshrl.u32 %v1055, 7
      %v1057 = vsub.s32 0, %v1056
      %v1058 = vrot.slane %v1053, %v1057
      %v1059 = vlaneseq
      %v1060 = vshrl.u32 %v1059, 7
      %v1061 = vsub.s32 1, %v1060
      %v1062 = vrot.slane %v1053, %v1061
      %v1063 = vcombine.low %v1058, %v1062
      %v1065 = vunpack.c.l.s4 1983009808
      %v1066 = vunpack.c.0.s8 %v1065
      %v1067 = vlaneseq
      %v1068 = vshrl.u32 %v1067, 7
      %v1069 = vsub.s32 %v1066, %v1068
      %v1070 = vrot.slane %v1063, %v1069
      %v1072 = vmul.f32 %v1052, %v1070
      %v1073 = vld [vmem:[%s4] sm:$0x3]
      %v1075 = vlaneseq
      %v1076 = vshrl.u32 %v1075, 7
      %v1077 = vsub.s32 0, %v1076
      %v1078 = vrot.slane %v1073, %v1077
      %v1079 = vlaneseq
      %v1080 = vshrl.u32 %v1079, 7
      %v1081 = vsub.s32 1, %v1080
      %v1082 = vrot.slane %v1073, %v1081
      %v1083 = vcombine.low %v1078, %v1082
      %v1085 = vunpack.c.l.s4 1983009808
      %v1086 = vunpack.c.0.s8 %v1085
      %v1087 = vlaneseq
      %v1088 = vshrl.u32 %v1087, 7
      %v1089 = vsub.s32 %v1086, %v1088
      %v1090 = vrot.slane %v1083, %v1089
      %v1092 = vadd.f32 %v1072, %v1090
      %v1093 = vld [vmem:[%s5] sm:$0xff]
      %v1094 = vld [vmem:[%s5 + $0x8] sm:$0xff]
      %v1095 = vld [vmem:[%s5 + $0x10] sm:$0xff]
      %v1096 = vld [vmem:[%s5 + $0x18] sm:$0xff]
      %v1097 = vld [vmem:[%s5 + $0x20] sm:$0xff]
      %v1098 = vld [vmem:[%s5 + $0x28] sm:$0xff]
      %v1099 = vld [vmem:[%s5 + $0x30] sm:$0xff]
      %v1100 = vld [vmem:[%s5 + $0x38] sm:$0xff]
      %v1101 = vld [vmem:[%s5 + $0x40] sm:$0xff]
      %v1102 = vld [vmem:[%s5 + $0x48] sm:$0xff]
      %v1103 = vld [vmem:[%s5 + $0x50] sm:$0xff]
      %v1104 = vld [vmem:[%s5 + $0x58] sm:$0xff]
      %v1105 = vld [vmem:[%s5 + $0x60] sm:$0xff]
      %v1106 = vld [vmem:[%s5 + $0x68] sm:$0xff]
      %v1107 = vld [vmem:[%s5 + $0x70] sm:$0xff]
      %v1108 = vld [vmem:[%s5 + $0x78] sm:$0xff]
      %v1109 = vld [vmem:[%s5 + $0x80] sm:$0xff]
      %v1110 = vld [vmem:[%s5 + $0x88] sm:$0xff]
      %v1111 = vld [vmem:[%s5 + $0x90] sm:$0xff]
      %v1112 = vld [vmem:[%s5 + $0x98] sm:$0xff]
      %v1113 = vld [vmem:[%s5 + $0xa0] sm:$0xff]
      %v1114 = vld [vmem:[%s5 + $0xa8] sm:$0xff]
      %v1115 = vld [vmem:[%s5 + $0xb0] sm:$0xff]
      %v1116 = vld [vmem:[%s5 + $0xb8] sm:$0xff]
      %v1117 = vld [vmem:[%s5 + $0xc0] sm:$0xff]
      %v1120 = vunpack.c.l.s4 1983009808
      %v1121 = vunpack.c.0.s8 %v1120
      %v1122 = vlaneseq
      %v1123 = vshrl.u32 %v1122, 7
      %v1124 = vsub.s32 %v1121, %v1123
      %v1125 = vrot.slane %v1092, %v1124
      %v1126 = vcombine.high %v1125, %v1125
      %vm1128 = vcmask 588800
      %v1129 = vsel %vm1128, %v1126, 0
      %1131 = vmatprep.subr.mxu0 0.0
      %1132 = vmatpush1.msra.mxu0 %v1093
      %1133 = vmatprep.subr.mxu0 0.0
      %1134 = vmatpush1.msra.mxu0 %v1094
      %1135 = vmatprep.subr.mxu0 0.0
      %1136 = vmatpush1.msra.mxu0 %v1095
      %1137 = vmatprep.subr.mxu0 0.0
      %1138 = vmatpush1.msra.mxu0 %v1096
      %1139 = vmatprep.subr.mxu0 0.0
      %1140 = vmatpush1.msra.mxu0 %v1097
      %1141 = vmatprep.subr.mxu0 0.0
      %1142 = vmatpush1.msra.mxu0 %v1098
      %1143 = vmatprep.subr.mxu0 0.0
      %1144 = vmatpush1.msra.mxu0 %v1099
      %1145 = vmatprep.subr.mxu0 0.0
      %1146 = vmatpush1.msra.mxu0 %v1100
      %1147 = vmatprep.subr.mxu0 0.0
      %1148 = vmatpush1.msra.mxu0 %v1101
      %1149 = vmatprep.subr.mxu0 0.0
      %1150 = vmatpush1.msra.mxu0 %v1102
      %1151 = vmatprep.subr.mxu0 0.0
      %1152 = vmatpush1.msra.mxu0 %v1103
      %1153 = vmatprep.subr.mxu0 0.0
      %1154 = vmatpush1.msra.mxu0 %v1104
      %1155 = vmatprep.subr.mxu0 0.0
      %1156 = vmatpush1.msra.mxu0 %v1105
      %1157 = vmatprep.subr.mxu0 0.0
      %1158 = vmatpush1.msra.mxu0 %v1106
      %1159 = vmatprep.subr.mxu0 0.0
      %1160 = vmatpush1.msra.mxu0 %v1107
      %1161 = vmatprep.subr.mxu0 0.0
      %1162 = vmatpush1.msra.mxu0 %v1108
      %1163 = vmatprep.subr.mxu0 0.0
      %1164 = vmatpush1.msra.mxu0 %v1109
      %1165 = vmatprep.subr.mxu0 0.0
      %1166 = vmatpush1.msra.mxu0 %v1110
      %1167 = vmatprep.subr.mxu0 0.0
      %1168 = vmatpush1.msra.mxu0 %v1111
      %1169 = vmatprep.subr.mxu0 0.0
      %1170 = vmatpush1.msra.mxu0 %v1112
      %1171 = vmatprep.subr.mxu0 0.0
      %1172 = vmatpush1.msra.mxu0 %v1113
      %1173 = vmatprep.subr.mxu0 0.0
      %1174 = vmatpush1.msra.mxu0 %v1114
      %1175 = vmatprep.subr.mxu0 0.0
      %1176 = vmatpush1.msra.mxu0 %v1115
      %1177 = vmatprep.subr.mxu0 0.0
      %1178 = vmatpush1.msra.mxu0 %v1116
      %1179 = vmatprep.subr.mxu0 0.0
      %1180 = vmatpush1.msra.mxu0 %v1117
      %1181 = vmatprep.subr.mxu0 0.0
      %1182 = vmatpush1.msra.mxu0 0.0
      %1183 = vmatprep.subr.mxu0 0.0
      %1184 = vmatpush1.msra.mxu0 0.0
      %1185 = vmatprep.subr.mxu0 0.0
      %1186 = vmatpush1.msra.mxu0 0.0
      %1187 = vmatprep.subr.mxu0 0.0
      %1188 = vmatpush1.msra.mxu0 0.0
      %1189 = vmatprep.subr.mxu0 0.0
      %1190 = vmatpush1.msra.mxu0 0.0
      %1191 = vmatprep.subr.mxu0 0.0
      %1192 = vmatpush1.msra.mxu0 0.0
      %1193 = vmatprep.subr.mxu0 0.0
      %1194 = vmatpush1.msra.mxu0 0.0
      %1195 = vmatprep.mubr.f32.mxu0 %v1129
      %1196 = vmatmul.mubr.f32.gmra.mrb[0].mxu0 %v1125
      %v1197 = vpop.f32.mrb[0].mxu0
      %v1198 = vadd.f32 0.0, %v1197
      %v1199 = vpop.f32.mrb[0].mxu0
      %1200 = vdwg.mxu0
      %vm1201 = vcmask 9216
      %v1202 = vsel %vm1201, %v1198, -inf
      %1203 = vmax.xlane.f32.xlu0 %v1202
      %v1204 = vpop.xlane.xlu0 %1203
      %v1205 = vsub.f32 %v1198, %v1204
      %v1206 = vmul.f32 %v1205, 1.442695
      %v1207 = vpow.pop %v1206
      %v1208 = vsel %vm1201, %v1207, 0.0
      %1209 = vadd.xlane.f32.xlu0 %v1208
      %v1210 = vpop.xlane.xlu0 %1209
      %v1211 = vrcp.pop %v1210
      %v1212 = vmul.f32 %v1207, %v1211
      %1213 = vst.msk [vmem:[#allocation3] sm:$0x3] %vm1201, %v1212
    $region33: #{identification_forward.3} parent=1 // pred_fallthru
      _
    // Predicated region
    $region34: #{identification_forward.3} parent=1 // pred_check
      _
    $region35: #{identification_forward.3} parent=1 // pred_check_branch
      %1215 = sbr.rel (0) target = $region37
    $region36: #{identification_forward.3} parent=1 // pred_region
      %s1217 = ssub.s32 32, 32
      %1218 = vsyncadd [#allocation4], %s1217
      %s1220 = sshll.u32 [#allocation3], 4
      %s1221 = int_to_ptr.vmem [resolvable:$true] %s1220
      %1223 = dma.vmem_to_hbm [thread:$0]  %s1221, 32, %s6, [#allocation4]
    $region37: #{identification_forward.3} parent=1 // pred_fallthru
      _
    // Predicated region
    $region38: #{identification_forward.3} parent=1 // pred_check
      _
    $region39: #{identification_forward.3} parent=1 // pred_check_branch
      %1225 = sbr.rel (0) target = $region41
    $region40: #{identification_forward.3} parent=1 // pred_region
      %1226 = dma.done [#allocation4], 32
    $region41: #{identification_forward.3} parent=1 // pred_fallthru
      _
    %1227 = vsyncpa [#allocation4], 1

</llo_original>
